<compile_context>
chip_gen: v7x
topology: tpu7x:2x2x1
jax: 0.10.0
libtpu: 0.0.40
codegen_flags: <defaults>
</compile_context>

<pallas_src>
import functools
import math

import numpy as np
import jax
import jax.numpy as jnp
from jax.experimental import pallas as pl
from jax.experimental.pallas import tpu as pltpu

_SCALE_CLAMP = math.log(1000.0 / 16.0)   # detectron2 Box2BoxTransform scale clamp


def _round_up(x, m):
    return ((x + m - 1) // m) * m


_VMEM_LIMIT_CACHE = None


def _vmem_limit_bytes():
    """Generation-aware VMEM limit: 3/4 of physical (96 MiB v5e/v6e, 48 MiB v7x)."""
    global _VMEM_LIMIT_CACHE
    if _VMEM_LIMIT_CACHE is None:
        cap = 64 * 1024 * 1024
        try:
            info = pltpu.get_tpu_info()
            cap = int(getattr(info, "vmem_capacity_bytes", cap))
        except Exception:
            pass
        _VMEM_LIMIT_CACHE = (cap // 4) * 3
    return _VMEM_LIMIT_CACHE


# ----------------------------------------------------------------------------
# Kernel 1: fused backbone — conv1(3x3,s2)+ReLU -> conv2(3x3,s2)+ReLU.
# Both convs are expressed as stride-1 2x2 shift-and-accumulate convs on a
# space-to-depth(4) input; the intermediate feature stays in VMEM/registers.
# ----------------------------------------------------------------------------
def _backbone_kernel(x_ref, w1_ref, b1_ref, w2_ref, b2_ref, o_ref, *, h4, w4, c_mid, c_out):
    x = x_ref[0]                                            # (h4+1, w4+1, 48) bf16
    c_in = x.shape[-1]

    acc1 = jnp.zeros((h4 * w4, c_mid), jnp.float32)
    for a in range(2):                                      # conv1: 2x2 shift & accumulate
        for b in range(2):
            tap = x[a:a + h4, b:b + w4, :].reshape(h4 * w4, c_in)
            acc1 = acc1 + jnp.dot(tap, w1_ref[a * 2 + b],
                                  preferred_element_type=jnp.float32)
    a1 = jnp.maximum(acc1 + b1_ref[...], 0.0)
    a1 = a1.astype(jnp.bfloat16).reshape(h4, w4, c_mid)

    # zero top/left pad of the intermediate feature (stays on-chip)
    zrow = jnp.zeros((1, w4, c_mid), jnp.bfloat16)
    zcol = jnp.zeros((h4 + 1, 1, c_mid), jnp.bfloat16)
    o1p = jnp.concatenate([zcol, jnp.concatenate([zrow, a1], axis=0)], axis=1)

    acc2 = jnp.zeros((h4 * w4, c_out), jnp.float32)
    for a in range(2):                                      # conv2: 2x2 shift & accumulate
        for b in range(2):
            tap = o1p[a:a + h4, b:b + w4, :].reshape(h4 * w4, c_mid)
            acc2 = acc2 + jnp.dot(tap, w2_ref[a * 2 + b],
                                  preferred_element_type=jnp.float32)
    out = jnp.maximum(acc2 + b2_ref[...], 0.0)
    o_ref[0] = out.reshape(h4, w4, c_out).astype(o_ref.dtype)


def pallas_backbone(x4p, w1cat, b1cat, w2cat, b2cat, c_out):
    """x4p: (N, H/4+1, W/4+1, 48) bf16 (space-to-depth, mean-padded).  -> (N,H/4,W/4,c_out) bf16."""
    N, h4p1, w4p1, c_in = x4p.shape
    h4, w4 = h4p1 - 1, w4p1 - 1
    c_mid = w1cat.shape[-1]
    # TODO(synk): for very large images row-tile the output (with a 1-row halo) instead of
    #             keeping the whole per-image s2d input resident; fine for p2-scale inputs.
    kern = functools.partial(_backbone_kernel, h4=h4, w4=w4, c_mid=c_mid, c_out=c_out)
    return pl.pallas_call(
        kern,
        out_shape=jax.ShapeDtypeStruct((N, h4, w4, c_out), jnp.bfloat16),
        grid=(N,),
        in_specs=[
            pl.BlockSpec((1, h4p1, w4p1, c_in), lambda n: (n, 0, 0, 0)),
            pl.BlockSpec(w1cat.shape, lambda n: (0, 0, 0)),
            pl.BlockSpec(b1cat.shape, lambda n: (0, 0)),
            pl.BlockSpec(w2cat.shape, lambda n: (0, 0, 0)),
            pl.BlockSpec(b2cat.shape, lambda n: (0, 0)),
        ],
        out_specs=pl.BlockSpec((1, h4, w4, c_out), lambda n: (n, 0, 0, 0)),
        compiler_params=pltpu.CompilerParams(
            dimension_semantics=("parallel",),
            vmem_limit_bytes=_vmem_limit_bytes(),
        ),
    )(x4p, w1cat, b1cat, w2cat, b2cat)


# ----------------------------------------------------------------------------
# Kernel 2: fused RPN — 3x3 stride-1 conv (shift-and-accumulate) + ReLU,
# transposed 1x1 head, sigmoid, anchor decode + clip; lane-friendly outputs.
# ----------------------------------------------------------------------------
def _rpn_kernel(x_ref, wc_ref, bc_ref, wht_ref, bht_ref, sc_ref, bx_ref, *,
                th, wo, c_in, c_rpn, stride, anchor_size, img_size):
    r0 = pl.multiple_of(pl.program_id(1) * th, th)
    win = x_ref[0, pl.ds(r0, th + 2), :, :]                 # (th+2, wo+2, c_in) bf16

    acc = jnp.zeros((th * wo, c_rpn), jnp.float32)
    for i in range(3):                                      # 3x3 conv: shift & accumulate
        for j in range(3):
            tap = win[i:i + th, j:j + wo, :].reshape(th * wo, c_in)
            acc = acc + jnp.dot(tap, wc_ref[i * 3 + j],
                                preferred_element_type=jnp.float32)
    t = jnp.maximum(acc + bc_ref[...], 0.0).astype(jnp.bfloat16)

    # transposed 1x1 head -> lane-major rows [obj, dx, dy, dw, dh, pad, pad, pad]
    head = jnp.einsum("oc,pc->op", wht_ref[...], t,
                      preferred_element_type=jnp.float32) + bht_ref[...]
    head = head.reshape(8, th, wo)
    obj, dxv, dyv, dwv, dhv = head[0], head[1], head[2], head[3], head[4]

    rows = (pl.program_id(1) * th
            + jax.lax.broadcasted_iota(jnp.int32, (th, wo), 0)).astype(jnp.float32)
    cols = jax.lax.broadcasted_iota(jnp.int32, (th, wo), 1).astype(jnp.float32)
    cxa = (cols + 0.5) * stride
    cya = (rows + 0.5) * stride

    ctr_x = dxv * anchor_size + cxa
    ctr_y = dyv * anchor_size + cya
    bw = jnp.exp(jnp.minimum(dwv, _SCALE_CLAMP)) * anchor_size
    bh = jnp.exp(jnp.minimum(dhv, _SCALE_CLAMP)) * anchor_size
    x1 = jnp.clip(ctr_x - 0.5 * bw, 0.0, img_size)
    y1 = jnp.clip(ctr_y - 0.5 * bh, 0.0, img_size)
    x2 = jnp.clip(ctr_x + 0.5 * bw, 0.0, img_size)
    y2 = jnp.clip(ctr_y + 0.5 * bh, 0.0, img_size)

    sc_ref[0] = jax.nn.sigmoid(obj)
    bx_ref[0] = jnp.stack([x1, y1, x2, y2], axis=0)


def pallas_rpn(feat, wc9, bc, wht, bht, stride, anchor_size, img_size):
    """feat: (N,Hf,Wf,C) bf16.  Returns (scores (N,A), boxes (N,A,4)) decoded+clipped."""
    N, Hf, Wf, C = feat.shape
    c_rpn = wc9.shape[-1]
    assert wc9.shape == (9, C, c_rpn)
    assert wht.shape == (8, c_rpn) and bht.shape == (8, 1)   # lane layout of the fused head

    # row tile: multiple of 8, aim for >= ~1024 rows of work, pad Hf to a multiple of it
    target = max(8, -(-1024 // Wf))
    th = min(_round_up(target, 8), _round_up(Hf, 8), 128)
    Hfp = _round_up(Hf, th)
    n_rt = Hfp // th

    fp = jnp.pad(feat, ((0, 0), (1, 1 + Hfp - Hf), (1, 1), (0, 0)))   # conv + row-tile pad
    # TODO(synk): for very large feature maps, halo-tile the input rows instead of keeping
    #             the whole padded per-image feature resident (matters on v7x's 64 MiB VMEM).

    kern = functools.partial(_rpn_kernel, th=th, wo=Wf, c_in=C, c_rpn=c_rpn,
                             stride=float(stride), anchor_size=float(anchor_size),
                             img_size=float(img_size))
    scores, boxes = pl.pallas_call(
        kern,
        out_shape=(jax.ShapeDtypeStruct((N, Hfp, Wf), jnp.float32),
                   jax.ShapeDtypeStruct((N, 4, Hfp, Wf), jnp.float32)),
        grid=(N, n_rt),
        in_specs=[
            pl.BlockSpec((1, Hfp + 2, Wf + 2, C), lambda n, r: (n, 0, 0, 0)),
            pl.BlockSpec(wc9.shape, lambda n, r: (0, 0, 0)),
            pl.BlockSpec(bc.shape, lambda n, r: (0, 0)),
            pl.BlockSpec(wht.shape, lambda n, r: (0, 0)),
            pl.BlockSpec(bht.shape, lambda n, r: (0, 0)),
        ],
        out_specs=(
            pl.BlockSpec((1, th, Wf), lambda n, r: (n, r, 0)),
            pl.BlockSpec((1, 4, th, Wf), lambda n, r: (n, 0, r, 0)),
        ),
        compiler_params=pltpu.CompilerParams(
            dimension_semantics=("parallel", "parallel"),
            vmem_limit_bytes=_vmem_limit_bytes(),
        ),
    )(fp, wc9, bc, wht, bht)

    scores = scores[:, :Hf, :].reshape(N, Hf * Wf)
    boxes = boxes[:, :, :Hf, :].reshape(N, 4, Hf * Wf).transpose(0, 2, 1)
    return scores, boxes


# ----------------------------------------------------------------------------
# Kernel 3: fused ROI box head — scalar-prefetch gather of pooled rows +
# fc1(+ReLU) + concatenated cls/bbox head.  One launch, no pooled-feature HBM pass.
# ----------------------------------------------------------------------------
def _roi_kernel(idx_ref, feat_ref, w1_ref, b1_ref, w2_ref, b2_ref, o_ref, *, m):
    rows = [feat_ref[pl.ds(idx_ref[r], 1), :] for r in range(m)]   # gather pooled rows
    x = jnp.concatenate(rows, axis=0).astype(jnp.bfloat16)         # (m, C)
    h = jnp.maximum(jnp.dot(x, w1_ref[...], preferred_element_type=jnp.float32)
                    + b1_ref[...], 0.0)
    out = jnp.dot(h.astype(jnp.bfloat16), w2_ref[...],
                  preferred_element_type=jnp.float32) + b2_ref[...]
    o_ref[...] = out


def pallas_roi_head(feat_flat, flat_idx, w1, b1, w2, b2):
    """feat_flat: (R, C).  flat_idx: (M,) int32 row indices.  Returns (M, N_out) f32."""
    M = flat_idx.shape[0]
    Mp = _round_up(max(M, 8), 8)
    idx = jnp.pad(flat_idx.astype(jnp.int32), (0, Mp - M))
    R, C = feat_flat.shape
    H = w1.shape[1]
    NO = w2.shape[1]

    fb = feat_flat.astype(jnp.bfloat16)
    w1b = w1.astype(jnp.bfloat16)
    b1f = b1.astype(jnp.float32).reshape(1, H)
    w2b = w2.astype(jnp.bfloat16)
    b2f = b2.astype(jnp.float32).reshape(1, NO)

    out = pl.pallas_call(
        functools.partial(_roi_kernel, m=Mp),
        out_shape=jax.ShapeDtypeStruct((Mp, NO), jnp.float32),
        grid_spec=pltpu.PrefetchScalarGridSpec(
            num_scalar_prefetch=1,
            grid=(1,),
            in_specs=[
                pl.BlockSpec((R, C), lambda i, idx: (0, 0)),
                pl.BlockSpec((C, H), lambda i, idx: (0, 0)),
                pl.BlockSpec((1, H), lambda i, idx: (0, 0)),
                pl.BlockSpec((H, NO), lambda i, idx: (0, 0)),
                pl.BlockSpec((1, NO), lambda i, idx: (0, 0)),
            ],
            out_specs=pl.BlockSpec((Mp, NO), lambda i, idx: (0, 0)),
        ),
        compiler_params=pltpu.CompilerParams(
            dimension_semantics=("arbitrary",),
            vmem_limit_bytes=_vmem_limit_bytes(),
        ),
    )(idx, fb, w1b, b1f, w2b, b2f)
    return out[:M]


# ----------------------------------------------------------------------------
# Box utilities (host glue)
# ----------------------------------------------------------------------------
def decode_boxes(anchors, deltas):
    wa = anchors[..., 2] - anchors[..., 0]
    ha = anchors[..., 3] - anchors[..., 1]
    cxa = anchors[..., 0] + 0.5 * wa
    cya = anchors[..., 1] + 0.5 * ha
    dx, dy = deltas[..., 0], deltas[..., 1]
    dw = jnp.minimum(deltas[..., 2], _SCALE_CLAMP)
    dh = jnp.minimum(deltas[..., 3], _SCALE_CLAMP)
    cx = dx * wa + cxa
    cy = dy * ha + cya
    w = jnp.exp(dw) * wa
    h = jnp.exp(dh) * ha
    return jnp.stack([cx - 0.5 * w, cy - 0.5 * h, cx + 0.5 * w, cy + 0.5 * h], axis=-1)


def clip_boxes(boxes, size):
    return jnp.clip(boxes, 0.0, float(size))


# ----------------------------------------------------------------------------
# GeneralizedRCNN (synthetic weights, inference path)
# ----------------------------------------------------------------------------
class GeneralizedRCNNPallas:
    def __init__(self, key, num_classes=2, topk_proposals=8):
        self.num_classes = num_classes
        self.topk = topk_proposals
        self.stride = 4            # backbone output stride ("p2"-like single level)
        self.anchor_size = 16.0
        self.size_divisibility = 32

        c_in, c1, c2, rpn_c, hid = 3, 16, 32, 32, 64
        self.c_in, self.c1, self.c2, self.rpn_c, self.hid = c_in, c1, c2, rpn_c, hid

        # cfg.MODEL.PIXEL_MEAN / PIXEL_STD (detectron2 defaults, BGR)
        mean = np.array([103.530, 116.280, 123.675], np.float32)
        std = np.array([1.0, 1.0, 1.0], np.float32)
        self.pixel_mean = mean
        self.pixel_std = std

        ks = jax.random.split(key, 8)

        def winit(k, shape, fan_in):
            return np.asarray(jax.random.normal(k, shape, jnp.float32)) / np.sqrt(float(fan_in))

        # backbone (3x3 convs, stride 2)
        w1 = winit(ks[0], (3, 3, c_in, c1), 3 * 3 * c_in)
        b1 = np.zeros((c1,), np.float32)
        w2 = winit(ks[1], (3, 3, c1, c2), 3 * 3 * c1)
        b2 = np.zeros((c2,), np.float32)
        # RPN head (A = 1 anchor per location)
        rpn_conv_w = winit(ks[2], (3, 3, c2, rpn_c), 3 * 3 * c2)
        rpn_conv_b = np.zeros((rpn_c,), np.float32)
        rpn_obj_w = winit(ks[3], (rpn_c, 1), rpn_c)
        rpn_obj_b = np.zeros((1,), np.float32)
        rpn_delta_w = winit(ks[4], (rpn_c, 4), rpn_c) * 0.1
        rpn_delta_b = np.zeros((4,), np.float32)
        # ROI box head
        fc1_w = winit(ks[5], (c2, hid), c2)
        fc1_b = np.zeros((hid,), np.float32)
        cls_w = winit(ks[6], (hid, num_classes + 1), hid)
        cls_b = np.zeros((num_classes + 1,), np.float32)
        bbox_w = winit(ks[7], (hid, 4 * num_classes), hid) * 0.1
        bbox_b = np.zeros((4 * num_classes,), np.float32)

        # --- fold (x - mean)/std normalization into conv1 ---
        w1e = w1 / std[None, None, :, None]
        b1e = b1 - np.einsum("ijco,c->o", w1, mean / std)

        # --- conv1 as a 2x2 stride-1 conv on space-to-depth(4) input ---
        # s2d channel index m = ey*4*Cin + ex*Cin + c ; output channel q = (dy*2+dx)*C1 + o
        cat1 = 4 * c1
        w1cat = np.zeros((2, 2, 16 * c_in, cat1), np.float32)
        for dy in range(2):
            for i in range(3):
                orr = 2 * dy + i - 1
                a, ey = (1, orr) if orr >= 0 else (0, 3)
                for dx in range(2):
                    for j in range(3):
                        occ = 2 * dx + j - 1
                        bb, ex = (1, occ) if occ >= 0 else (0, 3)
                        r0 = (ey * 4 + ex) * c_in
                        q0 = (dy * 2 + dx) * c1
                        w1cat[a, bb, r0:r0 + c_in, q0:q0 + c1] += w1e[i, j]
        self.w1cat = jnp.asarray(w1cat.reshape(4, 16 * c_in, cat1), jnp.bfloat16)
        self.b1cat = jnp.asarray(np.tile(b1e, 4).reshape(1, cat1), jnp.float32)

        # --- conv2 as a 2x2 stride-1 conv on the (dy,dx)-packed conv1 feature ---
        w2cat = np.zeros((2, 2, cat1, c2), np.float32)
        for a2 in range(2):
            for dy in range(2):
                i = 2 * a2 + dy - 1
                if not (0 <= i <= 2):
                    continue
                for b2_ in range(2):
                    for dx in range(2):
                        j = 2 * b2_ + dx - 1
                        if not (0 <= j <= 2):
                            continue
                        q0 = (dy * 2 + dx) * c1
                        w2cat[a2, b2_, q0:q0 + c1, :] += w2[i, j]
        self.w2cat = jnp.asarray(w2cat.reshape(4, cat1, c2), jnp.bfloat16)
        self.b2cat = jnp.asarray(b2.reshape(1, c2), jnp.float32)

        # --- RPN conv (9, C2, Cr) + transposed fused head (8, Cr): [obj, dx, dy, dw, dh, 0,0,0] ---
        self.rpn_wc9 = jnp.asarray(rpn_conv_w.reshape(9, c2, rpn_c), jnp.bfloat16)
        self.rpn_bc = jnp.asarray(rpn_conv_b.reshape(1, rpn_c), jnp.float32)
        wht = np.concatenate([rpn_obj_w, rpn_delta_w, np.zeros((rpn_c, 3), np.float32)], axis=1).T
        self.rpn_wht = jnp.asarray(wht, jnp.bfloat16)
        self.rpn_bht = jnp.asarray(
            np.concatenate([rpn_obj_b, rpn_delta_b, np.zeros((3,), np.float32)]).reshape(8, 1),
            jnp.float32)

        # --- ROI box head: fc1 + concatenated cls/bbox predictor ---
        self.fc1_w = jnp.asarray(fc1_w)
        self.fc1_b = jnp.asarray(fc1_b)
        self.roi_w = jnp.asarray(np.concatenate([cls_w, bbox_w], axis=1))
        self.roi_b = jnp.asarray(np.concatenate([cls_b, bbox_b]))

    # ---------------- preprocess_image ----------------
    def preprocess_image(self, images_nchw):
        N, C, H, W = images_nchw.shape
        assert H % self.size_divisibility == 0 and W % self.size_divisibility == 0
        x = jnp.transpose(images_nchw, (0, 2, 3, 1)).astype(jnp.float32)          # NHWC
        h4, w4 = H // 4, W // 4
        # space-to-depth(4): normalization is folded into the assembled conv1 weights.
        x4 = x.reshape(N, h4, 4, w4, 4, C).transpose(0, 1, 3, 2, 4, 5).reshape(N, h4, w4, 16 * C)
        pad_vec = jnp.asarray(np.tile(self.pixel_mean, 16), jnp.float32)
        base = jnp.broadcast_to(pad_vec, (N, h4 + 1, w4 + 1, 16 * C)).astype(jnp.bfloat16)
        x4p = jax.lax.dynamic_update_slice(base, x4.astype(jnp.bfloat16), (0, 1, 1, 0))
        return x4p

    # ---------------- backbone ----------------
    def backbone(self, x4p):
        p2 = pallas_backbone(x4p, self.w1cat, self.b1cat, self.w2cat, self.b2cat, self.c2)
        return {"p2": p2}   # (N, H/4, W/4, 32) bf16

    # ---------------- proposal_generator (RPN) ----------------
    def proposal_generator(self, features, image_size):
        f = features["p2"]
        scores, boxes = pallas_rpn(f, self.rpn_wc9, self.rpn_bc, self.rpn_wht, self.rpn_bht,
                                   self.stride, self.anchor_size, image_size)
        # TODO(synk): NMS over proposals has no clean Pallas equivalent; top-k only.
        top_scores, idx = jax.lax.top_k(scores, self.topk)
        prop_boxes = jnp.take_along_axis(boxes, idx[..., None], axis=1)          # (N, K, 4)
        return prop_boxes, top_scores

    # ---------------- roi_heads ----------------
    def roi_heads(self, features, proposals, image_size):
        f = features["p2"]
        N, Hf, Wf, C = f.shape
        K = proposals.shape[1]
        # TODO(synk): ROIAlign bilinear pooling not implemented; center-sample gather instead.
        cx = (proposals[..., 0] + proposals[..., 2]) * 0.5 / self.stride
        cy = (proposals[..., 1] + proposals[..., 3]) * 0.5 / self.stride
        ix = jnp.clip(jnp.round(cx).astype(jnp.int32), 0, Wf - 1)
        iy = jnp.clip(jnp.round(cy).astype(jnp.int32), 0, Hf - 1)
        n_idx = jnp.arange(N, dtype=jnp.int32)[:, None]
        flat_idx = (n_idx * (Hf * Wf) + iy * Wf + ix).reshape(N * K)
        feat_flat = f.reshape(N * Hf * Wf, C)

        # fused gather + fc1(+ReLU) + concatenated cls/bbox head (one Pallas launch)
        out = pallas_roi_head(feat_flat, flat_idx, self.fc1_w, self.fc1_b,
                              self.roi_w, self.roi_b)
        nc = self.num_classes
        cls_logits = out[:, : nc + 1]
        box_deltas = out[:, nc + 1: nc + 1 + 4 * nc]

        probs = jax.nn.softmax(cls_logits, axis=-1)[:, :nc]                      # foreground
        pred_classes = jnp.argmax(probs, axis=-1)
        scores = jnp.take_along_axis(probs, pred_classes[:, None], axis=1)[:, 0]

        box_deltas = box_deltas.reshape(N * K, nc, 4)
        sel_deltas = jnp.take_along_axis(
            box_deltas, jnp.repeat(pred_classes[:, None, None], 4, axis=2), axis=1
        )[:, 0, :]
        pred_boxes = clip_boxes(
            decode_boxes(proposals.reshape(N * K, 4), sel_deltas), image_size
        )
        return (
            pred_boxes.reshape(N, K, 4),
            scores.reshape(N, K),
            pred_classes.reshape(N, K),
        )

    # ---------------- _postprocess ----------------
    @staticmethod
    def _postprocess(pred_boxes, scores, classes, batched_inputs, image_size):
        results = []
        for i, inp in enumerate(batched_inputs):
            h = inp.get("height", image_size)
            w = inp.get("width", image_size)
            sx, sy = w / float(image_size), h / float(image_size)
            scale = jnp.array([sx, sy, sx, sy], jnp.float32)
            results.append({
                "instances": {
                    "pred_boxes": pred_boxes[i] * scale,
                    "scores": scores[i],
                    "pred_classes": classes[i],
                }
            })
        return results

    # ---------------- forward (inference path) ----------------
    def forward(self, batched_inputs):
        # TODO(synk): training-mode losses / rpn_attention mask-paste branch not modeled.
        images_nchw = jnp.stack([x["image"] for x in batched_inputs], axis=0)
        image_size = images_nchw.shape[2]
        x4p = self.preprocess_image(images_nchw)
        features = self.backbone(x4p)
        proposals, _ = self.proposal_generator(features, image_size)
        pred_boxes, scores, classes = self.roi_heads(features, proposals, image_size)
        return self._postprocess(pred_boxes, scores, classes, batched_inputs, image_size)


# ----------------------------------------------------------------------------
if __name__ == "__main__":
    key = jax.random.PRNGKey(0)
    k_model, k_img = jax.random.split(key)

    model = GeneralizedRCNNPallas(k_model)

    N, C, H, W = 2, 3, 32, 32
    raw = jax.random.uniform(k_img, (N, C, H, W), jnp.float32, 0.0, 255.0)
    batched_inputs = [
        {"image": raw[i], "height": H, "width": W} for i in range(N)
    ]

    outputs = model.forward(batched_inputs)
    jax.block_until_ready(outputs)
    print("KERNEL_OK")
</pallas_src>

<mosaic_0001>
module attributes {stable_mosaic.version = 11 : i64} {
  func.func @_backbone_kernel(%arg0: i32, %arg1: memref<1x9x9x48xbf16, #tpu.memory_space<vmem>>, %arg2: memref<4x48x64xbf16, #tpu.memory_space<vmem>>, %arg3: memref<1x64xf32, #tpu.memory_space<vmem>>, %arg4: memref<4x64x32xbf16, #tpu.memory_space<vmem>>, %arg5: memref<1x32xf32, #tpu.memory_space<vmem>>, %arg6: memref<1x8x8x32xbf16, #tpu.memory_space<vmem>>) attributes {dimension_semantics = [#tpu.dimension_semantics<parallel>], iteration_bounds = array<i64: 2>, scalar_prefetch = 0 : i64, scratch_operands = 0 : i64, tpu.core_type = #tpu.core_type<tc>, window_params = [{transform_indices = @transform_0, window_bounds = array<i64: 1, 9, 9, 48>}, {pipeline_mode = #tpu.pipeline_mode<synchronous>, transform_indices = @transform_1, window_bounds = array<i64: 4, 48, 64>}, {pipeline_mode = #tpu.pipeline_mode<synchronous>, transform_indices = @transform_2, window_bounds = array<i64: 1, 64>}, {pipeline_mode = #tpu.pipeline_mode<synchronous>, transform_indices = @transform_3, window_bounds = array<i64: 4, 64, 32>}, {pipeline_mode = #tpu.pipeline_mode<synchronous>, transform_indices = @transform_4, window_bounds = array<i64: 1, 32>}, {transform_indices = @transform_5, window_bounds = array<i64: 1, 8, 8, 32>}]} {
    %c0 = arith.constant 0 : index
    %c0_0 = arith.constant 0 : index
    %c0_1 = arith.constant 0 : index
    %c0_2 = arith.constant 0 : index
    %0 = vector.load %arg1[%c0, %c0_0, %c0_1, %c0_2] : memref<1x9x9x48xbf16, #tpu.memory_space<vmem>>, vector<1x9x9x48xbf16>
    %1 = vector.shape_cast %0 : vector<1x9x9x48xbf16> to vector<9x9x48xbf16>
    %cst = arith.constant 0.000000e+00 : f32
    %2 = vector.broadcast %cst : f32 to vector<64x64xf32>
    %3 = vector.extract_strided_slice %1 {offsets = [0, 0, 0], sizes = [8, 8, 48], strides = [1, 1, 1]} : vector<9x9x48xbf16> to vector<8x8x48xbf16>
    %4 = vector.shape_cast %3 : vector<8x8x48xbf16> to vector<64x48xbf16>
    %c0_3 = arith.constant 0 : index
    %c0_4 = arith.constant 0 : index
    %c0_5 = arith.constant 0 : index
    %5 = vector.load %arg2[%c0_3, %c0_4, %c0_5] : memref<4x48x64xbf16, #tpu.memory_space<vmem>>, vector<1x48x64xbf16>
    %6 = vector.shape_cast %5 : vector<1x48x64xbf16> to vector<48x64xbf16>
    %cst_6 = arith.constant dense<0.000000e+00> : vector<64x64xf32>
    %7 = tpu.matmul %4, %6, %cst_6 {dimension_numbers = #tpu.dot_dimension_numbers<[1], [0], [0], [1], [0, 0, 1, 1], [], []>} : vector<64x48xbf16>, vector<48x64xbf16>, vector<64x64xf32> -> vector<64x64xf32>
    %8 = arith.addf %2, %7 : vector<64x64xf32>
    %9 = vector.extract_strided_slice %1 {offsets = [0, 1, 0], sizes = [8, 8, 48], strides = [1, 1, 1]} : vector<9x9x48xbf16> to vector<8x8x48xbf16>
    %10 = vector.shape_cast %9 : vector<8x8x48xbf16> to vector<64x48xbf16>
    %c1 = arith.constant 1 : index
    %c0_7 = arith.constant 0 : index
    %c0_8 = arith.constant 0 : index
    %11 = vector.load %arg2[%c1, %c0_7, %c0_8] : memref<4x48x64xbf16, #tpu.memory_space<vmem>>, vector<1x48x64xbf16>
    %12 = vector.shape_cast %11 : vector<1x48x64xbf16> to vector<48x64xbf16>
    %cst_9 = arith.constant dense<0.000000e+00> : vector<64x64xf32>
    %13 = tpu.matmul %10, %12, %cst_9 {dimension_numbers = #tpu.dot_dimension_numbers<[1], [0], [0], [1], [0, 0, 1, 1], [], []>} : vector<64x48xbf16>, vector<48x64xbf16>, vector<64x64xf32> -> vector<64x64xf32>
    %14 = arith.addf %8, %13 : vector<64x64xf32>
    %15 = vector.extract_strided_slice %1 {offsets = [1, 0, 0], sizes = [8, 8, 48], strides = [1, 1, 1]} : vector<9x9x48xbf16> to vector<8x8x48xbf16>
    %16 = vector.shape_cast %15 : vector<8x8x48xbf16> to vector<64x48xbf16>
    %c2 = arith.constant 2 : index
    %c0_10 = arith.constant 0 : index
    %c0_11 = arith.constant 0 : index
    %17 = vector.load %arg2[%c2, %c0_10, %c0_11] : memref<4x48x64xbf16, #tpu.memory_space<vmem>>, vector<1x48x64xbf16>
    %18 = vector.shape_cast %17 : vector<1x48x64xbf16> to vector<48x64xbf16>
    %cst_12 = arith.constant dense<0.000000e+00> : vector<64x64xf32>
    %19 = tpu.matmul %16, %18, %cst_12 {dimension_numbers = #tpu.dot_dimension_numbers<[1], [0], [0], [1], [0, 0, 1, 1], [], []>} : vector<64x48xbf16>, vector<48x64xbf16>, vector<64x64xf32> -> vector<64x64xf32>
    %20 = arith.addf %14, %19 : vector<64x64xf32>
    %21 = vector.extract_strided_slice %1 {offsets = [1, 1, 0], sizes = [8, 8, 48], strides = [1, 1, 1]} : vector<9x9x48xbf16> to vector<8x8x48xbf16>
    %22 = vector.shape_cast %21 : vector<8x8x48xbf16> to vector<64x48xbf16>
    %c3 = arith.constant 3 : index
    %c0_13 = arith.constant 0 : index
    %c0_14 = arith.constant 0 : index
    %23 = vector.load %arg2[%c3, %c0_13, %c0_14] : memref<4x48x64xbf16, #tpu.memory_space<vmem>>, vector<1x48x64xbf16>
    %24 = vector.shape_cast %23 : vector<1x48x64xbf16> to vector<48x64xbf16>
    %cst_15 = arith.constant dense<0.000000e+00> : vector<64x64xf32>
    %25 = tpu.matmul %22, %24, %cst_15 {dimension_numbers = #tpu.dot_dimension_numbers<[1], [0], [0], [1], [0, 0, 1, 1], [], []>} : vector<64x48xbf16>, vector<48x64xbf16>, vector<64x64xf32> -> vector<64x64xf32>
    %26 = arith.addf %20, %25 : vector<64x64xf32>
    %c0_16 = arith.constant 0 : index
    %c0_17 = arith.constant 0 : index
    %27 = vector.load %arg3[%c0_16, %c0_17] : memref<1x64xf32, #tpu.memory_space<vmem>>, vector<1x64xf32>
    %28 = vector.broadcast %27 : vector<1x64xf32> to vector<64x64xf32>
    %29 = arith.addf %26, %28 : vector<64x64xf32>
    %cst_18 = arith.constant 0.000000e+00 : f32
    %30 = vector.broadcast %cst_18 : f32 to vector<64x64xf32>
    %31 = arith.maximumf %29, %30 : vector<64x64xf32>
    %32 = arith.truncf %31 : vector<64x64xf32> to vector<64x64xbf16>
    %33 = vector.shape_cast %32 : vector<64x64xbf16> to vector<8x8x64xbf16>
    %cst_19 = arith.constant 0.000000e+00 : bf16
    %34 = vector.broadcast %cst_19 : bf16 to vector<1x8x64xbf16>
    %cst_20 = arith.constant 0.000000e+00 : bf16
    %35 = vector.broadcast %cst_20 : bf16 to vector<9x1x64xbf16>
    %36 = tpu.concatenate %34, %33 in 0 : vector<1x8x64xbf16>, vector<8x8x64xbf16> -> vector<9x8x64xbf16>
    %37 = tpu.concatenate %35, %36 in 1 : vector<9x1x64xbf16>, vector<9x8x64xbf16> -> vector<9x9x64xbf16>
    %cst_21 = arith.constant 0.000000e+00 : f32
    %38 = vector.broadcast %cst_21 : f32 to vector<64x32xf32>
    %39 = vector.extract_strided_slice %37 {offsets = [0, 0, 0], sizes = [8, 8, 64], strides = [1, 1, 1]} : vector<9x9x64xbf16> to vector<8x8x64xbf16>
    %40 = vector.shape_cast %39 : vector<8x8x64xbf16> to vector<64x64xbf16>
    %c0_22 = arith.constant 0 : index
    %c0_23 = arith.constant 0 : index
    %c0_24 = arith.constant 0 : index
    %41 = vector.load %arg4[%c0_22, %c0_23, %c0_24] : memref<4x64x32xbf16, #tpu.memory_space<vmem>>, vector<1x64x32xbf16>
    %42 = vector.shape_cast %41 : vector<1x64x32xbf16> to vector<64x32xbf16>
    %cst_25 = arith.constant dense<0.000000e+00> : vector<64x32xf32>
    %43 = tpu.matmul %40, %42, %cst_25 {dimension_numbers = #tpu.dot_dimension_numbers<[1], [0], [0], [1], [0, 0, 1, 1], [], []>} : vector<64x64xbf16>, vector<64x32xbf16>, vector<64x32xf32> -> vector<64x32xf32>
    %44 = arith.addf %38, %43 : vector<64x32xf32>
    %45 = vector.extract_strided_slice %37 {offsets = [0, 1, 0], sizes = [8, 8, 64], strides = [1, 1, 1]} : vector<9x9x64xbf16> to vector<8x8x64xbf16>
    %46 = vector.shape_cast %45 : vector<8x8x64xbf16> to vector<64x64xbf16>
    %c1_26 = arith.constant 1 : index
    %c0_27 = arith.constant 0 : index
    %c0_28 = arith.constant 0 : index
    %47 = vector.load %arg4[%c1_26, %c0_27, %c0_28] : memref<4x64x32xbf16, #tpu.memory_space<vmem>>, vector<1x64x32xbf16>
    %48 = vector.shape_cast %47 : vector<1x64x32xbf16> to vector<64x32xbf16>
    %cst_29 = arith.constant dense<0.000000e+00> : vector<64x32xf32>
    %49 = tpu.matmul %46, %48, %cst_29 {dimension_numbers = #tpu.dot_dimension_numbers<[1], [0], [0], [1], [0, 0, 1, 1], [], []>} : vector<64x64xbf16>, vector<64x32xbf16>, vector<64x32xf32> -> vector<64x32xf32>
    %50 = arith.addf %44, %49 : vector<64x32xf32>
    %51 = vector.extract_strided_slice %37 {offsets = [1, 0, 0], sizes = [8, 8, 64], strides = [1, 1, 1]} : vector<9x9x64xbf16> to vector<8x8x64xbf16>
    %52 = vector.shape_cast %51 : vector<8x8x64xbf16> to vector<64x64xbf16>
    %c2_30 = arith.constant 2 : index
    %c0_31 = arith.constant 0 : index
    %c0_32 = arith.constant 0 : index
    %53 = vector.load %arg4[%c2_30, %c0_31, %c0_32] : memref<4x64x32xbf16, #tpu.memory_space<vmem>>, vector<1x64x32xbf16>
    %54 = vector.shape_cast %53 : vector<1x64x32xbf16> to vector<64x32xbf16>
    %cst_33 = arith.constant dense<0.000000e+00> : vector<64x32xf32>
    %55 = tpu.matmul %52, %54, %cst_33 {dimension_numbers = #tpu.dot_dimension_numbers<[1], [0], [0], [1], [0, 0, 1, 1], [], []>} : vector<64x64xbf16>, vector<64x32xbf16>, vector<64x32xf32> -> vector<64x32xf32>
    %56 = arith.addf %50, %55 : vector<64x32xf32>
    %57 = vector.extract_strided_slice %37 {offsets = [1, 1, 0], sizes = [8, 8, 64], strides = [1, 1, 1]} : vector<9x9x64xbf16> to vector<8x8x64xbf16>
    %58 = vector.shape_cast %57 : vector<8x8x64xbf16> to vector<64x64xbf16>
    %c3_34 = arith.constant 3 : index
    %c0_35 = arith.constant 0 : index
    %c0_36 = arith.constant 0 : index
    %59 = vector.load %arg4[%c3_34, %c0_35, %c0_36] : memref<4x64x32xbf16, #tpu.memory_space<vmem>>, vector<1x64x32xbf16>
    %60 = vector.shape_cast %59 : vector<1x64x32xbf16> to vector<64x32xbf16>
    %cst_37 = arith.constant dense<0.000000e+00> : vector<64x32xf32>
    %61 = tpu.matmul %58, %60, %cst_37 {dimension_numbers = #tpu.dot_dimension_numbers<[1], [0], [0], [1], [0, 0, 1, 1], [], []>} : vector<64x64xbf16>, vector<64x32xbf16>, vector<64x32xf32> -> vector<64x32xf32>
    %62 = arith.addf %56, %61 : vector<64x32xf32>
    %c0_38 = arith.constant 0 : index
    %c0_39 = arith.constant 0 : index
    %63 = vector.load %arg5[%c0_38, %c0_39] : memref<1x32xf32, #tpu.memory_space<vmem>>, vector<1x32xf32>
    %64 = vector.broadcast %63 : vector<1x32xf32> to vector<64x32xf32>
    %65 = arith.addf %62, %64 : vector<64x32xf32>
    %cst_40 = arith.constant 0.000000e+00 : f32
    %66 = vector.broadcast %cst_40 : f32 to vector<64x32xf32>
    %67 = arith.maximumf %65, %66 : vector<64x32xf32>
    %68 = vector.shape_cast %67 : vector<64x32xf32> to vector<8x8x32xf32>
    %69 = arith.truncf %68 : vector<8x8x32xf32> to vector<8x8x32xbf16>
    %c0_41 = arith.constant 0 : index
    %c0_42 = arith.constant 0 : index
    %c0_43 = arith.constant 0 : index
    %c0_44 = arith.constant 0 : index
    %70 = vector.load %arg6[%c0_41, %c0_42, %c0_43, %c0_44] : memref<1x8x8x32xbf16, #tpu.memory_space<vmem>>, vector<1x8x8x32xbf16>
    %71 = vector.shape_cast %70 : vector<1x8x8x32xbf16> to vector<8x8x32xbf16>
    %72 = vector.shape_cast %69 : vector<8x8x32xbf16> to vector<1x8x8x32xbf16>
    tpu.vector_store %arg6[%c0_41, %c0_42, %c0_43, %c0_44], %72 {strides = array<i32>} : memref<1x8x8x32xbf16, #tpu.memory_space<vmem>>, vector<1x8x8x32xbf16>,
    return
  }
  func.func @transform_0(%arg0: i32) -> (i32, i32, i32, i32) {
    %c0_i32 = arith.constant 0 : i32
    %c0_i32_0 = arith.constant 0 : i32
    %c0_i32_1 = arith.constant 0 : i32
    %c0_i32_2 = arith.constant 0 : i32
    return %arg0, %c0_i32, %c0_i32_0, %c0_i32_1 : i32, i32, i32, i32
  }
  func.func @transform_1(%arg0: i32) -> (i32, i32, i32) {
    %c0_i32 = arith.constant 0 : i32
    %c0_i32_0 = arith.constant 0 : i32
    %c0_i32_1 = arith.constant 0 : i32
    %c0_i32_2 = arith.constant 0 : i32
    return %c0_i32, %c0_i32_0, %c0_i32_1 : i32, i32, i32
  }
  func.func @transform_2(%arg0: i32) -> (i32, i32) {
    %c0_i32 = arith.constant 0 : i32
    %c0_i32_0 = arith.constant 0 : i32
    %c0_i32_1 = arith.constant 0 : i32
    return %c0_i32, %c0_i32_0 : i32, i32
  }
  func.func @transform_3(%arg0: i32) -> (i32, i32, i32) {
    %c0_i32 = arith.constant 0 : i32
    %c0_i32_0 = arith.constant 0 : i32
    %c0_i32_1 = arith.constant 0 : i32
    %c0_i32_2 = arith.constant 0 : i32
    return %c0_i32, %c0_i32_0, %c0_i32_1 : i32, i32, i32
  }
  func.func @transform_4(%arg0: i32) -> (i32, i32) {
    %c0_i32 = arith.constant 0 : i32
    %c0_i32_0 = arith.constant 0 : i32
    %c0_i32_1 = arith.constant 0 : i32
    return %c0_i32, %c0_i32_0 : i32, i32
  }
  func.func @transform_5(%arg0: i32) -> (i32, i32, i32, i32) {
    %c0_i32 = arith.constant 0 : i32
    %c0_i32_0 = arith.constant 0 : i32
    %c0_i32_1 = arith.constant 0 : i32
    %c0_i32_2 = arith.constant 0 : i32
    return %arg0, %c0_i32, %c0_i32_0, %c0_i32_1 : i32, i32, i32, i32
  }
}

</mosaic_0001>

<llo_original>
// kernel: tpu_custom_call.1
$region0: #{tpu_custom_call.1}
  #allocation0 [shape = 'u32[]', space=smem, size = 0x4, offset = 0x4, fixed_abs, tag = 'smem constant byte address 0x4 - core index']
  #allocation1 [shape = 'u32[144,128]{1,0:T(1,128)}', space=vmem, size = 0x12000, scoped, tag = 'internal scratch']
  %s0 = inlined_call_operand.vmem [shape: bf16[2,9,9,48], index: 0, kind: input, shape index: {}]
  %s1 = inlined_call_operand.vmem [shape: bf16[4,48,64], index: 1, kind: input, shape index: {}]
  %s2 = inlined_call_operand.vmem [shape: f32[1,64], index: 2, kind: input, shape index: {}]
  %s3 = inlined_call_operand.vmem [shape: bf16[4,64,32], index: 3, kind: input, shape index: {}]
  %s4 = inlined_call_operand.vmem [shape: f32[1,32], index: 4, kind: input, shape index: {}]
  %s5 = inlined_call_operand.hbm [shape: bf16[2,8,8,32], index: 5, kind: output, shape index: {}]
  %s6 = sld [smem:[#allocation0]]
  $region53: #{tpu_custom_call.1} parent=0
    _
  %s8 = ssub.s32 1, %s6
  %s9 = scalar_select 0, %s8, %s6
  $region1: #{tpu_custom_call.1} parent=0
    #allocation2 [shape = 'u8[32768]{0}', space=vmem, size = 0x8000, scoped, tag = 'output window, operand 0']
    #allocation3 [shape = 's32[2]{0}', space=sflag, size = 0x8, scoped, tag = 'scoped memory for tpu_custom_call.1']
    %10 = vsyncpa [#allocation3], 0
    %s11 = scalar_lea.sflag [#allocation3], 1
    %12 = vsyncpa %s11, 0
    loop: start=0, step=1, limit=4
    $region2: #{tpu_custom_call.1} parent=1 // loop_pre_header
      _
    $region3: #{tpu_custom_call.1} parent=1 // loop_header
      %s14 = sphi 0, %s18
      %p15 = scmp.ge.s32.totalorder %s14, 4
      %s24 = sphi 0, %s26
      %s27 = sphi 0, %s24
      %s28 = sphi 0, %s27
      %s44 = sphi 0, %s28
      %s48 = sphi 0, %s48
      %s50 = sphi 0, %s48
      %s51 = sphi 0, %s50
      %s65 = sphi 0, %s51
      %s69 = sphi 0, %s69
      %s71 = sphi 0, %s69
      %s72 = sphi 0, %s71
      %s86 = sphi 0, %s72
      %s90 = sphi 0, %s90
      %s92 = sphi 0, %s90
      %s93 = sphi 0, %s92
      %s107 = sphi 0, %s93
      %s111 = sphi 0, %s111
      %s113 = sphi 0, %s111
      %s114 = sphi 0, %s113
      %s128 = sphi 0, %s114
      %s134 = sphi 0, %s136
      %s137 = sphi 0, %s134
      %s138 = sphi 0, %s137
      %s154 = sphi 0, %s138
    $region4: #{tpu_custom_call.1} parent=1 // loop_header_branch
      %17 = sbr.rel (%p15) target = $region8
    $region5: #{tpu_custom_call.1} parent=1 // loop_body
      %s19 = ssub.s32 %s14, 1
      %s20 = ssub.s32 %s14, 2
      %s21 = sadd.s32 %s14, 1
      %s22 = ssub.s32 %s14, %s21
      %p23 = scmp.eq.s32.totalorder %s22, 0
      %s25 = sadd.s32 %s24, 1
      %s26 = scalar_select %p23, %s24, %s25
      %p29 = pneg %p23
      %p30 = scmp.eq.s32.totalorder %s14, 1
      %p31 = por %p29, %p30
      %p32 = scmp.ne.s32.totalorder %s24, %s27
      %p33 = scmp.eq.s32.totalorder %s14, 0
      %p34 = por %p32, %p33
      %p35 = scmp.ne.s32.totalorder %s24, %s27
      %p36 = scmp.eq.s32.totalorder %s19, 1
      %p37 = por %p35, %p36
      %p38 = scmp.ne.s32.totalorder %s27, %s28
      %p39 = scmp.eq.s32.totalorder %s19, 0
      %p40 = por %p38, %p39
      %p41 = scmp.ne.s32.totalorder %s27, %s28
      %p42 = scmp.eq.s32.totalorder %s20, 1
      %p43 = por %p41, %p42
      %p45 = scmp.ne.s32.totalorder %s28, %s44
      %p46 = scmp.eq.s32.totalorder %s20, 0
      %p47 = por %p45, %p46
      %s49 = sadd.s32 %s48, 1
      %p52 = scmp.eq.s32.totalorder %s14, 1
      %p53 = scmp.ne.s32.totalorder %s48, %s50
      %p54 = scmp.eq.s32.totalorder %s14, 0
      %p55 = por %p53, %p54
      %p56 = scmp.ne.s32.totalorder %s48, %s50
      %p57 = scmp.eq.s32.totalorder %s19, 1
      %p58 = por %p56, %p57
      %p59 = scmp.ne.s32.totalorder %s50, %s51
      %p60 = scmp.eq.s32.totalorder %s19, 0
      %p61 = por %p59, %p60
      %p62 = scmp.ne.s32.totalorder %s50, %s51
      %p63 = scmp.eq.s32.totalorder %s20, 1
      %p64 = por %p62, %p63
      %p66 = scmp.ne.s32.totalorder %s51, %s65
      %p67 = scmp.eq.s32.totalorder %s20, 0
      %p68 = por %p66, %p67
      %s70 = sadd.s32 %s69, 1
      %p73 = scmp.eq.s32.totalorder %s14, 1
      %p74 = scmp.ne.s32.totalorder %s69, %s71
      %p75 = scmp.eq.s32.totalorder %s14, 0
      %p76 = por %p74, %p75
      %p77 = scmp.ne.s32.totalorder %s69, %s71
      %p78 = scmp.eq.s32.totalorder %s19, 1
      %p79 = por %p77, %p78
      %p80 = scmp.ne.s32.totalorder %s71, %s72
      %p81 = scmp.eq.s32.totalorder %s19, 0
      %p82 = por %p80, %p81
      %p83 = scmp.ne.s32.totalorder %s71, %s72
      %p84 = scmp.eq.s32.totalorder %s20, 1
      %p85 = por %p83, %p84
      %p87 = scmp.ne.s32.totalorder %s72, %s86
      %p88 = scmp.eq.s32.totalorder %s20, 0
      %p89 = por %p87, %p88
      %s91 = sadd.s32 %s90, 1
      %p94 = scmp.eq.s32.totalorder %s14, 1
      %p95 = scmp.ne.s32.totalorder %s90, %s92
      %p96 = scmp.eq.s32.totalorder %s14, 0
      %p97 = por %p95, %p96
      %p98 = scmp.ne.s32.totalorder %s90, %s92
      %p99 = scmp.eq.s32.totalorder %s19, 1
      %p100 = por %p98, %p99
      %p101 = scmp.ne.s32.totalorder %s92, %s93
      %p102 = scmp.eq.s32.totalorder %s19, 0
      %p103 = por %p101, %p102
      %p104 = scmp.ne.s32.totalorder %s92, %s93
      %p105 = scmp.eq.s32.totalorder %s20, 1
      %p106 = por %p104, %p105
      %p108 = scmp.ne.s32.totalorder %s93, %s107
      %p109 = scmp.eq.s32.totalorder %s20, 0
      %p110 = por %p108, %p109
      %s112 = sadd.s32 %s111, 1
      %p115 = scmp.eq.s32.totalorder %s14, 1
      %p116 = scmp.ne.s32.totalorder %s111, %s113
      %p117 = scmp.eq.s32.totalorder %s14, 0
      %p118 = por %p116, %p117
      %p119 = scmp.ne.s32.totalorder %s111, %s113
      %p120 = scmp.eq.s32.totalorder %s19, 1
      %p121 = por %p119, %p120
      %p122 = scmp.ne.s32.totalorder %s113, %s114
      %p123 = scmp.eq.s32.totalorder %s19, 0
      %p124 = por %p122, %p123
      %p125 = scmp.ne.s32.totalorder %s113, %s114
      %p126 = scmp.eq.s32.totalorder %s20, 1
      %p127 = por %p125, %p126
      %p129 = scmp.ne.s32.totalorder %s114, %s128
      %p130 = scmp.eq.s32.totalorder %s20, 0
      %p131 = por %p129, %p130
      %s132 = ssub.s32 %s14, %s21
      %p133 = scmp.eq.s32.totalorder %s132, 0
      %s135 = sadd.s32 %s134, 1
      %s136 = scalar_select %p133, %s134, %s135
      %p139 = pneg %p133
      %p140 = scmp.eq.s32.totalorder %s14, 1
      %p141 = por %p139, %p140
      %p142 = scmp.ne.s32.totalorder %s134, %s137
      %p143 = scmp.eq.s32.totalorder %s14, 0
      %p144 = por %p142, %p143
      %p145 = scmp.ne.s32.totalorder %s134, %s137
      %p146 = scmp.eq.s32.totalorder %s19, 1
      %p147 = por %p145, %p146
      %p148 = scmp.ne.s32.totalorder %s137, %s138
      %p149 = scmp.eq.s32.totalorder %s19, 0
      %p150 = por %p148, %p149
      %p151 = scmp.ne.s32.totalorder %s137, %s138
      %p152 = scmp.eq.s32.totalorder %s20, 1
      %p153 = por %p151, %p152
      %p155 = scmp.ne.s32.totalorder %s138, %s154
      %p156 = scmp.eq.s32.totalorder %s20, 0
      %p157 = por %p155, %p156
      %p158 = scmp.le.s32.totalorder 1, %s14
      %p159 = scmp.lt.s32.totalorder %s14, 3
      %p160 = pnand %p158, %p159
      %p161 = pneg %p160
      // Predicated region
      $region9: #{tpu_custom_call.1} parent=5 // pred_check
        _
      $region10: #{tpu_custom_call.1} parent=5 // pred_check_branch
        %163 = sbr.rel (%p160) target = $region12
      $region11: #{tpu_custom_call.1} parent=5 // pred_region
        %s164 = ssub.s32 %s14, 1
        // Predicated region
        $region13: #{tpu_custom_call.1} parent=11 // pred_check
          %p165 = pneg %p61
        $region14: #{tpu_custom_call.1} parent=11 // pred_check_branch
          %167 = sbr.rel (%p165) target = $region16
        $region15: #{tpu_custom_call.1} parent=11 // pred_region
          _
        $region16: #{tpu_custom_call.1} parent=11 // pred_fallthru
          _
        // Predicated region
        $region17: #{tpu_custom_call.1} parent=11 // pred_check
          %p168 = pneg %p82
        $region18: #{tpu_custom_call.1} parent=11 // pred_check_branch
          %170 = sbr.rel (%p168) target = $region20
        $region19: #{tpu_custom_call.1} parent=11 // pred_region
          _
        $region20: #{tpu_custom_call.1} parent=11 // pred_fallthru
          _
        // Predicated region
        $region21: #{tpu_custom_call.1} parent=11 // pred_check
          %p171 = pneg %p103
        $region22: #{tpu_custom_call.1} parent=11 // pred_check_branch
          %173 = sbr.rel (%p171) target = $region24
        $region23: #{tpu_custom_call.1} parent=11 // pred_region
          _
        $region24: #{tpu_custom_call.1} parent=11 // pred_fallthru
          _
        // Predicated region
        $region25: #{tpu_custom_call.1} parent=11 // pred_check
          %p174 = pneg %p124
        $region26: #{tpu_custom_call.1} parent=11 // pred_check_branch
          %176 = sbr.rel (%p174) target = $region28
        $region27: #{tpu_custom_call.1} parent=11 // pred_region
          _
        $region28: #{tpu_custom_call.1} parent=11 // pred_fallthru
          _
      $region12: #{tpu_custom_call.1} parent=5 // pred_fallthru
        _
      %p177 = scmp.lt.s32.totalorder %s14, 2
      // Predicated region
      $region29: #{tpu_custom_call.1} parent=5 // pred_check
        %p178 = pneg %p177
      $region30: #{tpu_custom_call.1} parent=5 // pred_check_branch
        %180 = sbr.rel (%p178) target = $region32
      $region31: #{tpu_custom_call.1} parent=5 // pred_region
        // Predicated region
        $region33: #{tpu_custom_call.1} parent=31 // pred_check
          %p181 = pneg %p34
        $region34: #{tpu_custom_call.1} parent=31 // pred_check_branch
          %183 = sbr.rel (%p181) target = $region36
        $region35: #{tpu_custom_call.1} parent=31 // pred_region
          %p184 = scmp.lt.s32.totalorder %s14, 1
          %s185 = scalar_select %p184, %s14, 1
          %s186 = smul.addr %s185, 18
          %s187 = smul.addr %s186, 4
          %s188 = scalar_lea.vmem %s0, %s187
        $region36: #{tpu_custom_call.1} parent=31 // pred_fallthru
          _
      $region32: #{tpu_custom_call.1} parent=5 // pred_fallthru
        _
      %p189 = scmp.le.s32.totalorder 1, %s14
      %p190 = scmp.lt.s32.totalorder %s14, 3
      %p191 = pnand %p189, %p190
      %p192 = pneg %p191
      // Predicated region
      $region37: #{tpu_custom_call.1} parent=5 // pred_check
        _
      $region38: #{tpu_custom_call.1} parent=5 // pred_check_branch
        %194 = sbr.rel (%p191) target = $region40
      $region39: #{tpu_custom_call.1} parent=5 // pred_region
        %s195 = ssub.s32 %s14, 1
        %p196 = scmp.lt.s32.totalorder %s19, 1
        %s197 = scalar_select %p196, %s19, 1
        %s198 = smul.addr %s197, 18
        %s199 = smul.addr %s198, 4
        %s200 = scalar_lea.vmem %s0, %s199
        %p201 = pneg %p40
        %p202 = pneg %p37
        %p203 = pneg %p61
        %p204 = pneg %p58
        %p205 = pneg %p82
        %p206 = pneg %p79
        %p207 = pneg %p103
        %p208 = pneg %p100
        %p209 = pneg %p124
        %p210 = pneg %p121
        %p211 = pneg %p150
        %p212 = pneg %p147
        %s213 = sand.u32 %s137, 1
        %s214 = scalar_lea.sflag [#allocation3], %s213
        %s215 = sand.u32 %s137, 1
        %s216 = smul.addr %s215, 32
        %s217 = scalar_lea.vmem [#allocation2], %s216
        %p218 = scmp.lt.s32.totalorder %s19, 1
        %s219 = scalar_select %p218, %s19, 1
        %s220 = smul.addr %s219, 18
        %s221 = smul.addr %s220, 4
        %s222 = scalar_lea.vmem %s0, %s221
        %v224 = vld [vmem:[%s222] sm:$0xf]
        %v225 = vld [vmem:[%s222 + $0x4] sm:$0x1]
        %v226 = vld [vmem:[%s222 + $0x8] sm:$0xf]
        %v227 = vld [vmem:[%s222 + $0xc] sm:$0x1]
        %v228 = vld [vmem:[%s222 + $0x10] sm:$0xf]
        %v229 = vld [vmem:[%s222 + $0x14] sm:$0x1]
        %v230 = vld [vmem:[%s222 + $0x18] sm:$0xf]
        %v231 = vld [vmem:[%s222 + $0x1c] sm:$0x1]
        %v232 = vld [vmem:[%s222 + $0x20] sm:$0xf]
        %v233 = vld [vmem:[%s222 + $0x24] sm:$0x1]
        %v234 = vld [vmem:[%s222 + $0x28] sm:$0xf]
        %v235 = vld [vmem:[%s222 + $0x2c] sm:$0x1]
        %v236 = vld [vmem:[%s222 + $0x30] sm:$0xf]
        %v237 = vld [vmem:[%s222 + $0x34] sm:$0x1]
        %v238 = vld [vmem:[%s222 + $0x38] sm:$0xf]
        %v239 = vld [vmem:[%s222 + $0x3c] sm:$0x1]
        %v240 = vld [vmem:[%s222 + $0x40] sm:$0xf]
        %v241 = vld [vmem:[%s222 + $0x44] sm:$0x1]
        %v242 = vld [vmem:[%s1] sm:$0xf]
        %v243 = vld [vmem:[%s1 + $0x4] sm:$0xf]
        %v244 = vld [vmem:[%s1 + $0x8] sm:$0xf]
        %v245 = vld [vmem:[%s1 + $0xc] sm:$0xf]
        %v246 = vld [vmem:[%s1 + $0x10] sm:$0xf]
        %v247 = vld [vmem:[%s1 + $0x14] sm:$0xf]
        %vm248 = vsmask.f32 3328
        %vm249 = vsmask.f32 7440
        %vm250 = vmor %vm248, %vm249
        %v252 = vshrl.u32 %v224, 16
        %v254 = vrot.slane %v252, 4
        %v255 = vshll.u32 %v224, 16
        %v257 = vrot.slane %v255, 5
        %v258 = vor.u32 %v254, %v257
        %v259 = vrot.slane %v258, 4
        %v261 = vshll.u32 %v225, 16
        %v263 = vrot.slane %v261, 5
        %v264 = vsel %vm250, %v259, %v263
        %v266 = vshrl.u32 %v226, 16
        %v268 = vrot.slane %v266, 4
        %v269 = vshll.u32 %v226, 16
        %v271 = vrot.slane %v269, 5
        %v272 = vor.u32 %v268, %v271
        %v273 = vrot.slane %v272, 4
        %v275 = vshll.u32 %v227, 16
        %v277 = vrot.slane %v275, 5
        %v278 = vsel %vm250, %v273, %v277
        %v280 = vshrl.u32 %v228, 16
        %v282 = vrot.slane %v280, 4
        %v283 = vshll.u32 %v228, 16
        %v285 = vrot.slane %v283, 5
        %v286 = vor.u32 %v282, %v285
        %v287 = vrot.slane %v286, 4
        %v289 = vshll.u32 %v229, 16
        %v291 = vrot.slane %v289, 5
        %v292 = vsel %vm250, %v287, %v291
        %v294 = vshrl.u32 %v230, 16
        %v296 = vrot.slane %v294, 4
        %v297 = vshll.u32 %v230, 16
        %v299 = vrot.slane %v297, 5
        %v300 = vor.u32 %v296, %v299
        %v301 = vrot.slane %v300, 4
        %v303 = vshll.u32 %v231, 16
        %v305 = vrot.slane %v303, 5
        %v306 = vsel %vm250, %v301, %v305
        %v308 = vshrl.u32 %v232, 16
        %v310 = vrot.slane %v308, 4
        %v311 = vshll.u32 %v232, 16
        %v313 = vrot.slane %v311, 5
        %v314 = vor.u32 %v310, %v313
        %v315 = vrot.slane %v314, 4
        %v317 = vshll.u32 %v233, 16
        %v319 = vrot.slane %v317, 5
        %v320 = vsel %vm250, %v315, %v319
        %v322 = vshrl.u32 %v234, 16
        %v324 = vrot.slane %v322, 4
        %v325 = vshll.u32 %v234, 16
        %v327 = vrot.slane %v325, 5
        %v328 = vor.u32 %v324, %v327
        %v329 = vrot.slane %v328, 4
        %v331 = vshll.u32 %v235, 16
        %v333 = vrot.slane %v331, 5
        %v334 = vsel %vm250, %v329, %v333
        %v336 = vshrl.u32 %v236, 16
        %v338 = vrot.slane %v336, 4
        %v339 = vshll.u32 %v236, 16
        %v341 = vrot.slane %v339, 5
        %v342 = vor.u32 %v338, %v341
        %v343 = vrot.slane %v342, 4
        %v345 = vshll.u32 %v237, 16
        %v347 = vrot.slane %v345, 5
        %v348 = vsel %vm250, %v343, %v347
        %v350 = vshrl.u32 %v238, 16
        %v352 = vrot.slane %v350, 4
        %v353 = vshll.u32 %v238, 16
        %v355 = vrot.slane %v353, 5
        %v356 = vor.u32 %v352, %v355
        %v357 = vrot.slane %v356, 4
        %v359 = vshll.u32 %v239, 16
        %v361 = vrot.slane %v359, 5
        %v362 = vsel %vm250, %v357, %v361
        %s363 = scalar_lea.vmem %s1, 24
        %v364 = vld [vmem:[%s363] sm:$0xf]
        %v365 = vld [vmem:[%s363 + $0x4] sm:$0xf]
        %v366 = vld [vmem:[%s363 + $0x8] sm:$0xf]
        %v367 = vld [vmem:[%s363 + $0xc] sm:$0xf]
        %v368 = vld [vmem:[%s363 + $0x10] sm:$0xf]
        %v369 = vld [vmem:[%s363 + $0x14] sm:$0xf]
        %v370 = vunpack.c.l.b16 %v264
        %v371 = vunpack.c.l.b16 %v278
        %v372 = vunpack.c.l.b16 %v292
        %v373 = vunpack.c.l.b16 %v306
        %v374 = vunpack.c.l.b16 %v320
        %v375 = vunpack.c.l.b16 %v334
        %v376 = vunpack.c.l.b16 %v348
        %v377 = vunpack.c.l.b16 %v362
        %v378 = vpack.c.b16 %v371, %v370
        %v379 = vpack.c.b16 %v373, %v372
        %v380 = vpack.c.b16 %v375, %v374
        %v381 = vpack.c.b16 %v377, %v376
        %v388 = vunpack.c.l.b16 %v364
        %v389 = vunpack.c.l.b16 %v365
        %v390 = vunpack.c.l.b16 %v366
        %v391 = vunpack.c.l.b16 %v367
        %v392 = vunpack.c.l.b16 %v368
        %v393 = vunpack.c.l.b16 %v369
        %v394 = vpack.c.b16 %v389, %v388
        %v395 = vpack.c.b16 %v391, %v390
        %v396 = vpack.c.b16 %v393, %v392
        %vm400 = vcmask 392192
        %v402 = vsel %vm400, %v378, 0
        %v405 = vsel %vm400, %v379, 0
        %v408 = vsel %vm400, %v380, 0
        %v411 = vsel %vm400, %v381, 0
        %413 = vmatprep.subr.bf16.mxu0 0
        %414 = vmatpush1.bf16.msra.mxu0 %v394
        %415 = vmatprep.subr.bf16.mxu0 0
        %416 = vmatpush1.bf16.msra.mxu0 %v395
        %417 = vmatprep.subr.bf16.mxu0 0
        %418 = vmatpush1.bf16.msra.mxu0 %v396
        %419 = vmatprep.subr.bf16.mxu0 0
        %420 = vmatpush1.bf16.msra.mxu0 0
        %421 = vmatprep.subr.bf16.mxu0 0
        %422 = vmatpush1.bf16.msra.mxu0 0
        %423 = vmatprep.subr.bf16.mxu0 0
        %424 = vmatpush1.bf16.msra.mxu0 0
        %425 = vmatprep.subr.bf16.mxu0 0
        %426 = vmatpush1.bf16.msra.mxu0 0
        %427 = vmatprep.subr.bf16.mxu0 0
        %428 = vmatpush1.bf16.msra.mxu0 0
        %429 = vmatprep.subr.bf16.mxu0 0
        %430 = vmatpush1.bf16.msra.mxu0 0
        %431 = vmatprep.subr.bf16.mxu0 0
        %432 = vmatpush1.bf16.msra.mxu0 0
        %433 = vmatprep.subr.bf16.mxu0 0
        %434 = vmatpush1.bf16.msra.mxu0 0
        %435 = vmatprep.subr.bf16.mxu0 0
        %436 = vmatpush1.bf16.msra.mxu0 0
        %437 = vmatprep.subr.bf16.mxu0 0
        %438 = vmatpush1.bf16.msra.mxu0 0
        %439 = vmatprep.subr.bf16.mxu0 0
        %440 = vmatpush1.bf16.msra.mxu0 0
        %441 = vmatprep.subr.bf16.mxu0 0
        %442 = vmatpush1.bf16.msra.mxu0 0
        %443 = vmatprep.subr.bf16.mxu0 0
        %444 = vmatpush1.bf16.msra.mxu0 0
        %445 = vmatprep.mubr.bf16.mxu0 0
        %446 = vmatmul.mubr.bf16.gmra.mrb[0].mxu0 %v402
        %v447 = vpop.f32.mrb[0].mxu0
        %v448 = vadd.f32 0.0, %v447
        %v449 = vpop.f32.mrb[0].mxu0
        %v450 = vpop.f32.mrb[0].mxu0
        %v451 = vadd.f32 0.0, %v450
        %v452 = vpop.f32.mrb[0].mxu0
        %453 = vmatprep.mubr.bf16.mxu0 0
        %454 = vmatmul.mubr.bf16.gmra.mrb[0].mxu0 %v405
        %v455 = vpop.f32.mrb[0].mxu0
        %v456 = vadd.f32 0.0, %v455
        %v457 = vpop.f32.mrb[0].mxu0
        %v458 = vpop.f32.mrb[0].mxu0
        %v459 = vadd.f32 0.0, %v458
        %v460 = vpop.f32.mrb[0].mxu0
        %461 = vmatprep.mubr.bf16.mxu0 0
        %462 = vmatmul.mubr.bf16.gmra.mrb[0].mxu0 %v408
        %v463 = vpop.f32.mrb[0].mxu0
        %v464 = vadd.f32 0.0, %v463
        %v465 = vpop.f32.mrb[0].mxu0
        %v466 = vpop.f32.mrb[0].mxu0
        %v467 = vadd.f32 0.0, %v466
        %v468 = vpop.f32.mrb[0].mxu0
        %469 = vmatprep.mubr.bf16.mxu0 0
        %470 = vmatmul.mubr.bf16.gmra.mrb[0].mxu0 %v411
        %v471 = vpop.f32.mrb[0].mxu0
        %v472 = vadd.f32 0.0, %v471
        %v473 = vpop.f32.mrb[0].mxu0
        %v474 = vpop.f32.mrb[0].mxu0
        %v475 = vadd.f32 0.0, %v474
        %v476 = vpop.f32.mrb[0].mxu0
        %477 = vdwg.mxu0
        %v486 = vunpack.c.l.b16 %v224
        %v487 = vunpack.c.l.b16 %v226
        %v488 = vunpack.c.l.b16 %v228
        %v489 = vunpack.c.l.b16 %v230
        %v490 = vunpack.c.l.b16 %v232
        %v491 = vunpack.c.l.b16 %v234
        %v492 = vunpack.c.l.b16 %v236
        %v493 = vunpack.c.l.b16 %v238
        %v494 = vpack.c.b16 %v487, %v486
        %v495 = vpack.c.b16 %v489, %v488
        %v496 = vpack.c.b16 %v491, %v490
        %v497 = vpack.c.b16 %v493, %v492
        %v504 = vunpack.c.l.b16 %v242
        %v505 = vunpack.c.l.b16 %v243
        %v506 = vunpack.c.l.b16 %v244
        %v507 = vunpack.c.l.b16 %v245
        %v508 = vunpack.c.l.b16 %v246
        %v509 = vunpack.c.l.b16 %v247
        %v510 = vpack.c.b16 %v505, %v504
        %v511 = vpack.c.b16 %v507, %v506
        %v512 = vpack.c.b16 %v509, %v508
        %v517 = vsel %vm400, %v494, 0
        %v520 = vsel %vm400, %v495, 0
        %v523 = vsel %vm400, %v496, 0
        %v526 = vsel %vm400, %v497, 0
        %528 = vmatprep.subr.bf16.mxu0 0
        %529 = vmatpush1.bf16.msra.mxu0 %v510
        %530 = vmatprep.subr.bf16.mxu0 0
        %531 = vmatpush1.bf16.msra.mxu0 %v511
        %532 = vmatprep.subr.bf16.mxu0 0
        %533 = vmatpush1.bf16.msra.mxu0 %v512
        %534 = vmatprep.subr.bf16.mxu0 0
        %535 = vmatpush1.bf16.msra.mxu0 0
        %536 = vmatprep.subr.bf16.mxu0 0
        %537 = vmatpush1.bf16.msra.mxu0 0
        %538 = vmatprep.subr.bf16.mxu0 0
        %539 = vmatpush1.bf16.msra.mxu0 0
        %540 = vmatprep.subr.bf16.mxu0 0
        %541 = vmatpush1.bf16.msra.mxu0 0
        %542 = vmatprep.subr.bf16.mxu0 0
        %543 = vmatpush1.bf16.msra.mxu0 0
        %544 = vmatprep.subr.bf16.mxu0 0
        %545 = vmatpush1.bf16.msra.mxu0 0
        %546 = vmatprep.subr.bf16.mxu0 0
        %547 = vmatpush1.bf16.msra.mxu0 0
        %548 = vmatprep.subr.bf16.mxu0 0
        %549 = vmatpush1.bf16.msra.mxu0 0
        %550 = vmatprep.subr.bf16.mxu0 0
        %551 = vmatpush1.bf16.msra.mxu0 0
        %552 = vmatprep.subr.bf16.mxu0 0
        %553 = vmatpush1.bf16.msra.mxu0 0
        %554 = vmatprep.subr.bf16.mxu0 0
        %555 = vmatpush1.bf16.msra.mxu0 0
        %556 = vmatprep.subr.bf16.mxu0 0
        %557 = vmatpush1.bf16.msra.mxu0 0
        %558 = vmatprep.subr.bf16.mxu0 0
        %559 = vmatpush1.bf16.msra.mxu0 0
        %560 = vmatprep.mubr.bf16.mxu0 0
        %561 = vmatmul.mubr.bf16.gmra.mrb[0].mxu0 %v517
        %v562 = vpop.f32.mrb[0].mxu0
        %v563 = vadd.f32 %v448, %v562
        %v564 = vpop.f32.mrb[0].mxu0
        %v565 = vpop.f32.mrb[0].mxu0
        %v566 = vadd.f32 %v451, %v565
        %v567 = vpop.f32.mrb[0].mxu0
        %568 = vmatprep.mubr.bf16.mxu0 0
        %569 = vmatmul.mubr.bf16.gmra.mrb[0].mxu0 %v520
        %v570 = vpop.f32.mrb[0].mxu0
        %v571 = vadd.f32 %v456, %v570
        %v572 = vpop.f32.mrb[0].mxu0
        %v573 = vpop.f32.mrb[0].mxu0
        %v574 = vadd.f32 %v459, %v573
        %v575 = vpop.f32.mrb[0].mxu0
        %576 = vmatprep.mubr.bf16.mxu0 0
        %577 = vmatmul.mubr.bf16.gmra.mrb[0].mxu0 %v523
        %v578 = vpop.f32.mrb[0].mxu0
        %v579 = vadd.f32 %v464, %v578
        %v580 = vpop.f32.mrb[0].mxu0
        %v581 = vpop.f32.mrb[0].mxu0
        %v582 = vadd.f32 %v467, %v581
        %v583 = vpop.f32.mrb[0].mxu0
        %584 = vmatprep.mubr.bf16.mxu0 0
        %585 = vmatmul.mubr.bf16.gmra.mrb[0].mxu0 %v526
        %v586 = vpop.f32.mrb[0].mxu0
        %v587 = vadd.f32 %v472, %v586
        %v588 = vpop.f32.mrb[0].mxu0
        %v589 = vpop.f32.mrb[0].mxu0
        %v590 = vadd.f32 %v475, %v589
        %v591 = vpop.f32.mrb[0].mxu0
        %592 = vdwg.mxu0
        %s593 = scalar_lea.vmem %s1, 48
        %v594 = vld [vmem:[%s593] sm:$0xf]
        %v595 = vld [vmem:[%s593 + $0x4] sm:$0xf]
        %v596 = vld [vmem:[%s593 + $0x8] sm:$0xf]
        %v597 = vld [vmem:[%s593 + $0xc] sm:$0xf]
        %v598 = vld [vmem:[%s593 + $0x10] sm:$0xf]
        %v599 = vld [vmem:[%s593 + $0x14] sm:$0xf]
        %v601 = vunpack.c.l.b16 %v240
        %v602 = vpack.c.b16 %v488, %v487
        %v603 = vpack.c.b16 %v490, %v489
        %v604 = vpack.c.b16 %v492, %v491
        %v605 = vpack.c.b16 %v601, %v493
        %v612 = vunpack.c.l.b16 %v594
        %v613 = vunpack.c.l.b16 %v595
        %v614 = vunpack.c.l.b16 %v596
        %v615 = vunpack.c.l.b16 %v597
        %v616 = vunpack.c.l.b16 %v598
        %v617 = vunpack.c.l.b16 %v599
        %v618 = vpack.c.b16 %v613, %v612
        %v619 = vpack.c.b16 %v615, %v614
        %v620 = vpack.c.b16 %v617, %v616
        %v625 = vsel %vm400, %v602, 0
        %v628 = vsel %vm400, %v603, 0
        %v631 = vsel %vm400, %v604, 0
        %v634 = vsel %vm400, %v605, 0
        %636 = vmatprep.subr.bf16.mxu0 0
        %637 = vmatpush1.bf16.msra.mxu0 %v618
        %638 = vmatprep.subr.bf16.mxu0 0
        %639 = vmatpush1.bf16.msra.mxu0 %v619
        %640 = vmatprep.subr.bf16.mxu0 0
        %641 = vmatpush1.bf16.msra.mxu0 %v620
        %642 = vmatprep.subr.bf16.mxu0 0
        %643 = vmatpush1.bf16.msra.mxu0 0
        %644 = vmatprep.subr.bf16.mxu0 0
        %645 = vmatpush1.bf16.msra.mxu0 0
        %646 = vmatprep.subr.bf16.mxu0 0
        %647 = vmatpush1.bf16.msra.mxu0 0
        %648 = vmatprep.subr.bf16.mxu0 0
        %649 = vmatpush1.bf16.msra.mxu0 0
        %650 = vmatprep.subr.bf16.mxu0 0
        %651 = vmatpush1.bf16.msra.mxu0 0
        %652 = vmatprep.subr.bf16.mxu0 0
        %653 = vmatpush1.bf16.msra.mxu0 0
        %654 = vmatprep.subr.bf16.mxu0 0
        %655 = vmatpush1.bf16.msra.mxu0 0
        %656 = vmatprep.subr.bf16.mxu0 0
        %657 = vmatpush1.bf16.msra.mxu0 0
        %658 = vmatprep.subr.bf16.mxu0 0
        %659 = vmatpush1.bf16.msra.mxu0 0
        %660 = vmatprep.subr.bf16.mxu0 0
        %661 = vmatpush1.bf16.msra.mxu0 0
        %662 = vmatprep.subr.bf16.mxu0 0
        %663 = vmatpush1.bf16.msra.mxu0 0
        %664 = vmatprep.subr.bf16.mxu0 0
        %665 = vmatpush1.bf16.msra.mxu0 0
        %666 = vmatprep.subr.bf16.mxu0 0
        %667 = vmatpush1.bf16.msra.mxu0 0
        %668 = vmatprep.mubr.bf16.mxu0 0
        %669 = vmatmul.mubr.bf16.gmra.mrb[0].mxu0 %v625
        %v670 = vpop.f32.mrb[0].mxu0
        %v671 = vadd.f32 0.0, %v670
        %v672 = vpop.f32.mrb[0].mxu0
        %v673 = vpop.f32.mrb[0].mxu0
        %v674 = vadd.f32 0.0, %v673
        %v675 = vpop.f32.mrb[0].mxu0
        %676 = vmatprep.mubr.bf16.mxu0 0
        %677 = vmatmul.mubr.bf16.gmra.mrb[0].mxu0 %v628
        %v678 = vpop.f32.mrb[0].mxu0
        %v679 = vadd.f32 0.0, %v678
        %v680 = vpop.f32.mrb[0].mxu0
        %v681 = vpop.f32.mrb[0].mxu0
        %v682 = vadd.f32 0.0, %v681
        %v683 = vpop.f32.mrb[0].mxu0
        %684 = vmatprep.mubr.bf16.mxu0 0
        %685 = vmatmul.mubr.bf16.gmra.mrb[0].mxu0 %v631
        %v686 = vpop.f32.mrb[0].mxu0
        %v687 = vadd.f32 0.0, %v686
        %v688 = vpop.f32.mrb[0].mxu0
        %v689 = vpop.f32.mrb[0].mxu0
        %v690 = vadd.f32 0.0, %v689
        %v691 = vpop.f32.mrb[0].mxu0
        %692 = vmatprep.mubr.bf16.mxu0 0
        %693 = vmatmul.mubr.bf16.gmra.mrb[0].mxu0 %v634
        %v694 = vpop.f32.mrb[0].mxu0
        %v695 = vadd.f32 0.0, %v694
        %v696 = vpop.f32.mrb[0].mxu0
        %v697 = vpop.f32.mrb[0].mxu0
        %v698 = vadd.f32 0.0, %v697
        %v699 = vpop.f32.mrb[0].mxu0
        %700 = vdwg.mxu0
        %v701 = vadd.f32 %v563, %v671
        %v702 = vadd.f32 %v566, %v674
        %v703 = vadd.f32 %v571, %v679
        %v704 = vadd.f32 %v574, %v682
        %v705 = vadd.f32 %v579, %v687
        %v706 = vadd.f32 %v582, %v690
        %v707 = vadd.f32 %v587, %v695
        %v708 = vadd.f32 %v590, %v698
        %v710 = vshrl.u32 %v240, 16
        %v712 = vrot.slane %v710, 4
        %v713 = vshll.u32 %v240, 16
        %v715 = vrot.slane %v713, 5
        %v716 = vor.u32 %v712, %v715
        %v717 = vrot.slane %v716, 4
        %v719 = vshll.u32 %v241, 16
        %v721 = vrot.slane %v719, 5
        %v722 = vsel %vm250, %v717, %v721
        %s723 = scalar_lea.vmem %s1, 72
        %v724 = vld [vmem:[%s723] sm:$0xf]
        %v725 = vld [vmem:[%s723 + $0x4] sm:$0xf]
        %v726 = vld [vmem:[%s723 + $0x8] sm:$0xf]
        %v727 = vld [vmem:[%s723 + $0xc] sm:$0xf]
        %v728 = vld [vmem:[%s723 + $0x10] sm:$0xf]
        %v729 = vld [vmem:[%s723 + $0x14] sm:$0xf]
        %v730 = vunpack.c.l.b16 %v722
        %v731 = vpack.c.b16 %v372, %v371
        %v732 = vpack.c.b16 %v374, %v373
        %v733 = vpack.c.b16 %v376, %v375
        %v734 = vpack.c.b16 %v730, %v377
        %v741 = vunpack.c.l.b16 %v724
        %v742 = vunpack.c.l.b16 %v725
        %v743 = vunpack.c.l.b16 %v726
        %v744 = vunpack.c.l.b16 %v727
        %v745 = vunpack.c.l.b16 %v728
        %v746 = vunpack.c.l.b16 %v729
        %v747 = vpack.c.b16 %v742, %v741
        %v748 = vpack.c.b16 %v744, %v743
        %v749 = vpack.c.b16 %v746, %v745
        %v754 = vsel %vm400, %v731, 0
        %v757 = vsel %vm400, %v732, 0
        %v760 = vsel %vm400, %v733, 0
        %v763 = vsel %vm400, %v734, 0
        %765 = vmatprep.subr.bf16.mxu0 0
        %766 = vmatpush1.bf16.msra.mxu0 %v747
        %767 = vmatprep.subr.bf16.mxu0 0
        %768 = vmatpush1.bf16.msra.mxu0 %v748
        %769 = vmatprep.subr.bf16.mxu0 0
        %770 = vmatpush1.bf16.msra.mxu0 %v749
        %771 = vmatprep.subr.bf16.mxu0 0
        %772 = vmatpush1.bf16.msra.mxu0 0
        %773 = vmatprep.subr.bf16.mxu0 0
        %774 = vmatpush1.bf16.msra.mxu0 0
        %775 = vmatprep.subr.bf16.mxu0 0
        %776 = vmatpush1.bf16.msra.mxu0 0
        %777 = vmatprep.subr.bf16.mxu0 0
        %778 = vmatpush1.bf16.msra.mxu0 0
        %779 = vmatprep.subr.bf16.mxu0 0
        %780 = vmatpush1.bf16.msra.mxu0 0
        %781 = vmatprep.subr.bf16.mxu0 0
        %782 = vmatpush1.bf16.msra.mxu0 0
        %783 = vmatprep.subr.bf16.mxu0 0
        %784 = vmatpush1.bf16.msra.mxu0 0
        %785 = vmatprep.subr.bf16.mxu0 0
        %786 = vmatpush1.bf16.msra.mxu0 0
        %787 = vmatprep.subr.bf16.mxu0 0
        %788 = vmatpush1.bf16.msra.mxu0 0
        %789 = vmatprep.subr.bf16.mxu0 0
        %790 = vmatpush1.bf16.msra.mxu0 0
        %791 = vmatprep.subr.bf16.mxu0 0
        %792 = vmatpush1.bf16.msra.mxu0 0
        %793 = vmatprep.subr.bf16.mxu0 0
        %794 = vmatpush1.bf16.msra.mxu0 0
        %795 = vmatprep.subr.bf16.mxu0 0
        %796 = vmatpush1.bf16.msra.mxu0 0
        %797 = vmatprep.mubr.bf16.mxu0 0
        %798 = vmatmul.mubr.bf16.gmra.mrb[0].mxu0 %v754
        %v799 = vpop.f32.mrb[0].mxu0
        %v800 = vadd.f32 0.0, %v799
        %v801 = vpop.f32.mrb[0].mxu0
        %v802 = vpop.f32.mrb[0].mxu0
        %v803 = vadd.f32 0.0, %v802
        %v804 = vpop.f32.mrb[0].mxu0
        %805 = vmatprep.mubr.bf16.mxu0 0
        %806 = vmatmul.mubr.bf16.gmra.mrb[0].mxu0 %v757
        %v807 = vpop.f32.mrb[0].mxu0
        %v808 = vadd.f32 0.0, %v807
        %v809 = vpop.f32.mrb[0].mxu0
        %v810 = vpop.f32.mrb[0].mxu0
        %v811 = vadd.f32 0.0, %v810
        %v812 = vpop.f32.mrb[0].mxu0
        %813 = vmatprep.mubr.bf16.mxu0 0
        %814 = vmatmul.mubr.bf16.gmra.mrb[0].mxu0 %v760
        %v815 = vpop.f32.mrb[0].mxu0
        %v816 = vadd.f32 0.0, %v815
        %v817 = vpop.f32.mrb[0].mxu0
        %v818 = vpop.f32.mrb[0].mxu0
        %v819 = vadd.f32 0.0, %v818
        %v820 = vpop.f32.mrb[0].mxu0
        %821 = vmatprep.mubr.bf16.mxu0 0
        %822 = vmatmul.mubr.bf16.gmra.mrb[0].mxu0 %v763
        %v823 = vpop.f32.mrb[0].mxu0
        %v824 = vadd.f32 0.0, %v823
        %v825 = vpop.f32.mrb[0].mxu0
        %v826 = vpop.f32.mrb[0].mxu0
        %v827 = vadd.f32 0.0, %v826
        %v828 = vpop.f32.mrb[0].mxu0
        %829 = vdwg.mxu0
        %v830 = vadd.f32 %v701, %v800
        %v831 = vadd.f32 %v702, %v803
        %v832 = vadd.f32 %v703, %v808
        %v833 = vadd.f32 %v704, %v811
        %v834 = vadd.f32 %v705, %v816
        %v835 = vadd.f32 %v706, %v819
        %v836 = vadd.f32 %v707, %v824
        %v837 = vadd.f32 %v708, %v827
        %v838 = vld [vmem:[%s2] sm:$0x1]
        %v840 = vlaneseq
        %v841 = vshrl.u32 %v840, 7
        %v842 = vsub.s32 0, %v841
        %v843 = vrot.slane %v838, %v842
        %v845 = vadd.f32 %v830, %v843
        %v846 = vadd.f32 %v831, %v843
        %v847 = vadd.f32 %v832, %v843
        %v848 = vadd.f32 %v833, %v843
        %v849 = vadd.f32 %v834, %v843
        %v850 = vadd.f32 %v835, %v843
        %v851 = vadd.f32 %v836, %v843
        %v852 = vadd.f32 %v837, %v843
        %v853 = vmax.f32 %v845, 0.0
        %v854 = vmax.f32 %v846, 0.0
        %v855 = vmax.f32 %v847, 0.0
        %v856 = vmax.f32 %v848, 0.0
        %v857 = vmax.f32 %v849, 0.0
        %v858 = vmax.f32 %v850, 0.0
        %v859 = vmax.f32 %v851, 0.0
        %v860 = vmax.f32 %v852, 0.0
        %v861 = vpack.c.bf16 %v854, %v853
        %v862 = vpack.c.bf16 %v856, %v855
        %v863 = vpack.c.bf16 %v858, %v857
        %v864 = vpack.c.bf16 %v860, %v859
        %v869 = vunpack.c.l.b16 %v861
        %v870 = vunpack.c.h.b16 %v861
        %v871 = vunpack.c.l.b16 %v862
        %v872 = vunpack.c.h.b16 %v862
        %v873 = vunpack.c.l.b16 %v863
        %v874 = vunpack.c.h.b16 %v863
        %v875 = vunpack.c.l.b16 %v864
        %v876 = vunpack.c.h.b16 %v864
        %v877 = vpack.c.b16 %v869, %v869
        %v878 = vpack.c.b16 %v870, %v870
        %v879 = vpack.c.b16 %v871, %v871
        %v880 = vpack.c.b16 %v872, %v872
        %v881 = vpack.c.b16 %v873, %v873
        %v882 = vpack.c.b16 %v874, %v874
        %v883 = vpack.c.b16 %v875, %v875
        %v884 = vpack.c.b16 %v876, %v876
        %v886 = vshrl.u32 0, 16
        %v888 = vrot.slane %v886, 7
        %v889 = vshll.u32 0, 16
        %v891 = vor.u32 %v888, %v889
        %v893 = vshrl.u32 %v877, 16
        %v895 = vrot.slane %v893, 7
        %v896 = vshll.u32 %v877, 16
        %v898 = vor.u32 %v895, %v896
        %v900 = vshrl.u32 %v878, 16
        %v902 = vrot.slane %v900, 7
        %v903 = vshll.u32 %v878, 16
        %v905 = vor.u32 %v902, %v903
        %v907 = vshrl.u32 %v879, 16
        %v909 = vrot.slane %v907, 7
        %v910 = vshll.u32 %v879, 16
        %v912 = vor.u32 %v909, %v910
        %v914 = vshrl.u32 %v880, 16
        %v916 = vrot.slane %v914, 7
        %v917 = vshll.u32 %v880, 16
        %v919 = vor.u32 %v916, %v917
        %v921 = vshrl.u32 %v881, 16
        %v923 = vrot.slane %v921, 7
        %v924 = vshll.u32 %v881, 16
        %v926 = vor.u32 %v923, %v924
        %v928 = vshrl.u32 %v882, 16
        %v930 = vrot.slane %v928, 7
        %v931 = vshll.u32 %v882, 16
        %v933 = vor.u32 %v930, %v931
        %v935 = vshrl.u32 %v883, 16
        %v937 = vrot.slane %v935, 7
        %v938 = vshll.u32 %v883, 16
        %v940 = vor.u32 %v937, %v938
        %v942 = vshrl.u32 %v884, 16
        %v944 = vrot.slane %v942, 7
        %v945 = vshll.u32 %v884, 16
        %v947 = vor.u32 %v944, %v945
        %vm957 = vcmask 1040384
        %vm958 = vsmask.f32 256
        %vm959 = vmand %vm957, %vm958
        %v960 = vsel %vm959, 0, %v891
        %v961 = vsel %vm959, 0, %v898
        %v962 = vsel %vm959, 0, %v905
        %v963 = vsel %vm959, 0, %v912
        %v964 = vsel %vm959, 0, %v919
        %v965 = vsel %vm959, 0, %v926
        %v966 = vsel %vm959, 0, %v933
        %v967 = vsel %vm959, 0, %v940
        %v968 = vsel %vm959, 0, %v947
        %v969 = vld [vmem:[%s3] sm:$0xf]
        %v970 = vld [vmem:[%s3 + $0x4] sm:$0xf]
        %v971 = vld [vmem:[%s3 + $0x8] sm:$0xf]
        %v972 = vld [vmem:[%s3 + $0xc] sm:$0xf]
        %v973 = vld [vmem:[%s3 + $0x10] sm:$0xf]
        %v974 = vld [vmem:[%s3 + $0x14] sm:$0xf]
        %v975 = vld [vmem:[%s3 + $0x18] sm:$0xf]
        %v976 = vld [vmem:[%s3 + $0x1c] sm:$0xf]
        %v985 = vunpack.c.l.b16 %v960
        %v986 = vunpack.c.h.b16 %v960
        %v987 = vunpack.c.l.b16 %v961
        %v988 = vunpack.c.h.b16 %v961
        %v989 = vunpack.c.l.b16 %v962
        %v990 = vunpack.c.h.b16 %v962
        %v991 = vunpack.c.l.b16 %v963
        %v992 = vunpack.c.h.b16 %v963
        %v993 = vunpack.c.l.b16 %v964
        %v994 = vunpack.c.h.b16 %v964
        %v995 = vunpack.c.l.b16 %v965
        %v996 = vunpack.c.h.b16 %v965
        %v997 = vunpack.c.l.b16 %v966
        %v998 = vunpack.c.h.b16 %v966
        %v999 = vunpack.c.l.b16 %v967
        %v1000 = vunpack.c.h.b16 %v967
        %v1001 = vpack.c.b16 %v985, %v985
        %v1002 = vpack.c.b16 %v986, %v986
        %v1003 = vpack.c.b16 %v987, %v987
        %v1004 = vpack.c.b16 %v988, %v988
        %v1005 = vpack.c.b16 %v989, %v989
        %v1006 = vpack.c.b16 %v990, %v990
        %v1007 = vpack.c.b16 %v991, %v991
        %v1008 = vpack.c.b16 %v992, %v992
        %v1009 = vpack.c.b16 %v993, %v993
        %v1010 = vpack.c.b16 %v994, %v994
        %v1011 = vpack.c.b16 %v995, %v995
        %v1012 = vpack.c.b16 %v996, %v996
        %v1013 = vpack.c.b16 %v997, %v997
        %v1014 = vpack.c.b16 %v998, %v998
        %v1015 = vpack.c.b16 %v999, %v999
        %v1016 = vpack.c.b16 %v1000, %v1000
        %v1018 = vshrl.u32 %v1001, 16
        %v1020 = vrot.slane %v1018, 4
        %v1021 = vshll.u32 %v1001, 16
        %v1023 = vrot.slane %v1021, 5
        %v1024 = vor.u32 %v1020, %v1023
        %v1025 = vrot.slane %v1024, 4
        %v1027 = vshll.u32 %v1002, 16
        %v1029 = vrot.slane %v1027, 5
        %v1030 = vsel %vm250, %v1025, %v1029
        %v1032 = vshrl.u32 %v1003, 16
        %v1034 = vrot.slane %v1032, 4
        %v1035 = vshll.u32 %v1003, 16
        %v1037 = vrot.slane %v1035, 5
        %v1038 = vor.u32 %v1034, %v1037
        %v1039 = vrot.slane %v1038, 4
        %v1041 = vshll.u32 %v1004, 16
        %v1043 = vrot.slane %v1041, 5
        %v1044 = vsel %vm250, %v1039, %v1043
        %v1046 = vshrl.u32 %v1005, 16
        %v1048 = vrot.slane %v1046, 4
        %v1049 = vshll.u32 %v1005, 16
        %v1051 = vrot.slane %v1049, 5
        %v1052 = vor.u32 %v1048, %v1051
        %v1053 = vrot.slane %v1052, 4
        %v1055 = vshll.u32 %v1006, 16
        %v1057 = vrot.slane %v1055, 5
        %v1058 = vsel %vm250, %v1053, %v1057
        %v1060 = vshrl.u32 %v1007, 16
        %v1062 = vrot.slane %v1060, 4
        %v1063 = vshll.u32 %v1007, 16
        %v1065 = vrot.slane %v1063, 5
        %v1066 = vor.u32 %v1062, %v1065
        %v1067 = vrot.slane %v1066, 4
        %v1069 = vshll.u32 %v1008, 16
        %v1071 = vrot.slane %v1069, 5
        %v1072 = vsel %vm250, %v1067, %v1071
        %v1074 = vshrl.u32 %v1009, 16
        %v1076 = vrot.slane %v1074, 4
        %v1077 = vshll.u32 %v1009, 16
        %v1079 = vrot.slane %v1077, 5
        %v1080 = vor.u32 %v1076, %v1079
        %v1081 = vrot.slane %v1080, 4
        %v1083 = vshll.u32 %v1010, 16
        %v1085 = vrot.slane %v1083, 5
        %v1086 = vsel %vm250, %v1081, %v1085
        %v1088 = vshrl.u32 %v1011, 16
        %v1090 = vrot.slane %v1088, 4
        %v1091 = vshll.u32 %v1011, 16
        %v1093 = vrot.slane %v1091, 5
        %v1094 = vor.u32 %v1090, %v1093
        %v1095 = vrot.slane %v1094, 4
        %v1097 = vshll.u32 %v1012, 16
        %v1099 = vrot.slane %v1097, 5
        %v1100 = vsel %vm250, %v1095, %v1099
        %v1102 = vshrl.u32 %v1013, 16
        %v1104 = vrot.slane %v1102, 4
        %v1105 = vshll.u32 %v1013, 16
        %v1107 = vrot.slane %v1105, 5
        %v1108 = vor.u32 %v1104, %v1107
        %v1109 = vrot.slane %v1108, 4
        %v1111 = vshll.u32 %v1014, 16
        %v1113 = vrot.slane %v1111, 5
        %v1114 = vsel %vm250, %v1109, %v1113
        %v1116 = vshrl.u32 %v1015, 16
        %v1118 = vrot.slane %v1116, 4
        %v1119 = vshll.u32 %v1015, 16
        %v1121 = vrot.slane %v1119, 5
        %v1122 = vor.u32 %v1118, %v1121
        %v1123 = vrot.slane %v1122, 4
        %v1125 = vshll.u32 %v1016, 16
        %v1127 = vrot.slane %v1125, 5
        %v1128 = vsel %vm250, %v1123, %v1127
        %s1129 = scalar_lea.vmem %s3, 32
        %v1130 = vld [vmem:[%s1129] sm:$0xf]
        %v1131 = vld [vmem:[%s1129 + $0x4] sm:$0xf]
        %v1132 = vld [vmem:[%s1129 + $0x8] sm:$0xf]
        %v1133 = vld [vmem:[%s1129 + $0xc] sm:$0xf]
        %v1134 = vld [vmem:[%s1129 + $0x10] sm:$0xf]
        %v1135 = vld [vmem:[%s1129 + $0x14] sm:$0xf]
        %v1136 = vld [vmem:[%s1129 + $0x18] sm:$0xf]
        %v1137 = vld [vmem:[%s1129 + $0x1c] sm:$0xf]
        %v1138 = vunpack.c.l.b16 %v1030
        %v1139 = vunpack.c.l.b16 %v1044
        %v1140 = vunpack.c.l.b16 %v1058
        %v1141 = vunpack.c.l.b16 %v1072
        %v1142 = vunpack.c.l.b16 %v1086
        %v1143 = vunpack.c.l.b16 %v1100
        %v1144 = vunpack.c.l.b16 %v1114
        %v1145 = vunpack.c.l.b16 %v1128
        %v1146 = vpack.c.b16 %v1139, %v1138
        %v1147 = vpack.c.b16 %v1141, %v1140
        %v1148 = vpack.c.b16 %v1143, %v1142
        %v1149 = vpack.c.b16 %v1145, %v1144
        %v1158 = vunpack.c.l.b16 %v1130
        %v1159 = vunpack.c.l.b16 %v1131
        %v1160 = vunpack.c.l.b16 %v1132
        %v1161 = vunpack.c.l.b16 %v1133
        %v1162 = vunpack.c.l.b16 %v1134
        %v1163 = vunpack.c.l.b16 %v1135
        %v1164 = vunpack.c.l.b16 %v1136
        %v1165 = vunpack.c.l.b16 %v1137
        %v1166 = vpack.c.b16 %v1159, %v1158
        %v1167 = vpack.c.b16 %v1161, %v1160
        %v1168 = vpack.c.b16 %v1163, %v1162
        %v1169 = vpack.c.b16 %v1165, %v1164
        %vm1174 = vcmask 523264
        %v1176 = vsel %vm1174, %v1146, 0
        %v1179 = vsel %vm1174, %v1147, 0
        %v1182 = vsel %vm1174, %v1148, 0
        %v1185 = vsel %vm1174, %v1149, 0
        %1187 = vmatprep.subr.bf16.mxu0 0
        %1188 = vmatpush1.bf16.msra.mxu0 %v1166
        %1189 = vmatprep.subr.bf16.mxu0 0
        %1190 = vmatpush1.bf16.msra.mxu0 %v1167
        %1191 = vmatprep.subr.bf16.mxu0 0
        %1192 = vmatpush1.bf16.msra.mxu0 %v1168
        %1193 = vmatprep.subr.bf16.mxu0 0
        %1194 = vmatpush1.bf16.msra.mxu0 %v1169
        %1195 = vmatprep.subr.bf16.mxu0 0
        %1196 = vmatpush1.bf16.msra.mxu0 0
        %1197 = vmatprep.subr.bf16.mxu0 0
        %1198 = vmatpush1.bf16.msra.mxu0 0
        %1199 = vmatprep.subr.bf16.mxu0 0
        %1200 = vmatpush1.bf16.msra.mxu0 0
        %1201 = vmatprep.subr.bf16.mxu0 0
        %1202 = vmatpush1.bf16.msra.mxu0 0
        %1203 = vmatprep.subr.bf16.mxu0 0
        %1204 = vmatpush1.bf16.msra.mxu0 0
        %1205 = vmatprep.subr.bf16.mxu0 0
        %1206 = vmatpush1.bf16.msra.mxu0 0
        %1207 = vmatprep.subr.bf16.mxu0 0
        %1208 = vmatpush1.bf16.msra.mxu0 0
        %1209 = vmatprep.subr.bf16.mxu0 0
        %1210 = vmatpush1.bf16.msra.mxu0 0
        %1211 = vmatprep.subr.bf16.mxu0 0
        %1212 = vmatpush1.bf16.msra.mxu0 0
        %1213 = vmatprep.subr.bf16.mxu0 0
        %1214 = vmatpush1.bf16.msra.mxu0 0
        %1215 = vmatprep.subr.bf16.mxu0 0
        %1216 = vmatpush1.bf16.msra.mxu0 0
        %1217 = vmatprep.subr.bf16.mxu0 0
        %1218 = vmatpush1.bf16.msra.mxu0 0
        %1219 = vmatprep.mubr.bf16.mxu0 0
        %1220 = vmatmul.mubr.bf16.gmra.mrb[0].mxu0 %v1176
        %v1221 = vpop.f32.mrb[0].mxu0
        %v1222 = vadd.f32 0.0, %v1221
        %v1223 = vpop.f32.mrb[0].mxu0
        %v1224 = vpop.f32.mrb[0].mxu0
        %v1225 = vadd.f32 0.0, %v1224
        %v1226 = vpop.f32.mrb[0].mxu0
        %1227 = vmatprep.mubr.bf16.mxu0 0
        %1228 = vmatmul.mubr.bf16.gmra.mrb[0].mxu0 %v1179
        %v1229 = vpop.f32.mrb[0].mxu0
        %v1230 = vadd.f32 0.0, %v1229
        %v1231 = vpop.f32.mrb[0].mxu0
        %v1232 = vpop.f32.mrb[0].mxu0
        %v1233 = vadd.f32 0.0, %v1232
        %v1234 = vpop.f32.mrb[0].mxu0
        %1235 = vmatprep.mubr.bf16.mxu0 0
        %1236 = vmatmul.mubr.bf16.gmra.mrb[0].mxu0 %v1182
        %v1237 = vpop.f32.mrb[0].mxu0
        %v1238 = vadd.f32 0.0, %v1237
        %v1239 = vpop.f32.mrb[0].mxu0
        %v1240 = vpop.f32.mrb[0].mxu0
        %v1241 = vadd.f32 0.0, %v1240
        %v1242 = vpop.f32.mrb[0].mxu0
        %1243 = vmatprep.mubr.bf16.mxu0 0
        %1244 = vmatmul.mubr.bf16.gmra.mrb[0].mxu0 %v1185
        %v1245 = vpop.f32.mrb[0].mxu0
        %v1246 = vadd.f32 0.0, %v1245
        %v1247 = vpop.f32.mrb[0].mxu0
        %v1248 = vpop.f32.mrb[0].mxu0
        %v1249 = vadd.f32 0.0, %v1248
        %v1250 = vpop.f32.mrb[0].mxu0
        %1251 = vdwg.mxu0
        %v1252 = vpack.c.b16 %v987, %v985
        %v1253 = vpack.c.b16 %v991, %v989
        %v1254 = vpack.c.b16 %v995, %v993
        %v1255 = vpack.c.b16 %v999, %v997
        %v1264 = vunpack.c.l.b16 %v969
        %v1265 = vunpack.c.l.b16 %v970
        %v1266 = vunpack.c.l.b16 %v971
        %v1267 = vunpack.c.l.b16 %v972
        %v1268 = vunpack.c.l.b16 %v973
        %v1269 = vunpack.c.l.b16 %v974
        %v1270 = vunpack.c.l.b16 %v975
        %v1271 = vunpack.c.l.b16 %v976
        %v1272 = vpack.c.b16 %v1265, %v1264
        %v1273 = vpack.c.b16 %v1267, %v1266
        %v1274 = vpack.c.b16 %v1269, %v1268
        %v1275 = vpack.c.b16 %v1271, %v1270
        %v1281 = vsel %vm1174, %v1252, 0
        %v1284 = vsel %vm1174, %v1253, 0
        %v1287 = vsel %vm1174, %v1254, 0
        %v1290 = vsel %vm1174, %v1255, 0
        %1292 = vmatprep.subr.bf16.mxu0 0
        %1293 = vmatpush1.bf16.msra.mxu0 %v1272
        %1294 = vmatprep.subr.bf16.mxu0 0
        %1295 = vmatpush1.bf16.msra.mxu0 %v1273
        %1296 = vmatprep.subr.bf16.mxu0 0
        %1297 = vmatpush1.bf16.msra.mxu0 %v1274
        %1298 = vmatprep.subr.bf16.mxu0 0
        %1299 = vmatpush1.bf16.msra.mxu0 %v1275
        %1300 = vmatprep.subr.bf16.mxu0 0
        %1301 = vmatpush1.bf16.msra.mxu0 0
        %1302 = vmatprep.subr.bf16.mxu0 0
        %1303 = vmatpush1.bf16.msra.mxu0 0
        %1304 = vmatprep.subr.bf16.mxu0 0
        %1305 = vmatpush1.bf16.msra.mxu0 0
        %1306 = vmatprep.subr.bf16.mxu0 0
        %1307 = vmatpush1.bf16.msra.mxu0 0
        %1308 = vmatprep.subr.bf16.mxu0 0
        %1309 = vmatpush1.bf16.msra.mxu0 0
        %1310 = vmatprep.subr.bf16.mxu0 0
        %1311 = vmatpush1.bf16.msra.mxu0 0
        %1312 = vmatprep.subr.bf16.mxu0 0
        %1313 = vmatpush1.bf16.msra.mxu0 0
        %1314 = vmatprep.subr.bf16.mxu0 0
        %1315 = vmatpush1.bf16.msra.mxu0 0
        %1316 = vmatprep.subr.bf16.mxu0 0
        %1317 = vmatpush1.bf16.msra.mxu0 0
        %1318 = vmatprep.subr.bf16.mxu0 0
        %1319 = vmatpush1.bf16.msra.mxu0 0
        %1320 = vmatprep.subr.bf16.mxu0 0
        %1321 = vmatpush1.bf16.msra.mxu0 0
        %1322 = vmatprep.subr.bf16.mxu0 0
        %1323 = vmatpush1.bf16.msra.mxu0 0
        %1324 = vmatprep.mubr.bf16.mxu0 0
        %1325 = vmatmul.mubr.bf16.gmra.mrb[0].mxu0 %v1281
        %v1326 = vpop.f32.mrb[0].mxu0
        %v1327 = vadd.f32 %v1222, %v1326
        %v1328 = vpop.f32.mrb[0].mxu0
        %v1329 = vpop.f32.mrb[0].mxu0
        %v1330 = vadd.f32 %v1225, %v1329
        %v1331 = vpop.f32.mrb[0].mxu0
        %1332 = vmatprep.mubr.bf16.mxu0 0
        %1333 = vmatmul.mubr.bf16.gmra.mrb[0].mxu0 %v1284
        %v1334 = vpop.f32.mrb[0].mxu0
        %v1335 = vadd.f32 %v1230, %v1334
        %v1336 = vpop.f32.mrb[0].mxu0
        %v1337 = vpop.f32.mrb[0].mxu0
        %v1338 = vadd.f32 %v1233, %v1337
        %v1339 = vpop.f32.mrb[0].mxu0
        %1340 = vmatprep.mubr.bf16.mxu0 0
        %1341 = vmatmul.mubr.bf16.gmra.mrb[0].mxu0 %v1287
        %v1342 = vpop.f32.mrb[0].mxu0
        %v1343 = vadd.f32 %v1238, %v1342
        %v1344 = vpop.f32.mrb[0].mxu0
        %v1345 = vpop.f32.mrb[0].mxu0
        %v1346 = vadd.f32 %v1241, %v1345
        %v1347 = vpop.f32.mrb[0].mxu0
        %1348 = vmatprep.mubr.bf16.mxu0 0
        %1349 = vmatmul.mubr.bf16.gmra.mrb[0].mxu0 %v1290
        %v1350 = vpop.f32.mrb[0].mxu0
        %v1351 = vadd.f32 %v1246, %v1350
        %v1352 = vpop.f32.mrb[0].mxu0
        %v1353 = vpop.f32.mrb[0].mxu0
        %v1354 = vadd.f32 %v1249, %v1353
        %v1355 = vpop.f32.mrb[0].mxu0
        %1356 = vdwg.mxu0
        %s1357 = scalar_lea.vmem %s3, 64
        %v1358 = vld [vmem:[%s1357] sm:$0xf]
        %v1359 = vld [vmem:[%s1357 + $0x4] sm:$0xf]
        %v1360 = vld [vmem:[%s1357 + $0x8] sm:$0xf]
        %v1361 = vld [vmem:[%s1357 + $0xc] sm:$0xf]
        %v1362 = vld [vmem:[%s1357 + $0x10] sm:$0xf]
        %v1363 = vld [vmem:[%s1357 + $0x14] sm:$0xf]
        %v1364 = vld [vmem:[%s1357 + $0x18] sm:$0xf]
        %v1365 = vld [vmem:[%s1357 + $0x1c] sm:$0xf]
        %v1367 = vunpack.c.l.b16 %v968
        %v1368 = vpack.c.b16 %v989, %v987
        %v1369 = vpack.c.b16 %v993, %v991
        %v1370 = vpack.c.b16 %v997, %v995
        %v1371 = vpack.c.b16 %v1367, %v999
        %v1380 = vunpack.c.l.b16 %v1358
        %v1381 = vunpack.c.l.b16 %v1359
        %v1382 = vunpack.c.l.b16 %v1360
        %v1383 = vunpack.c.l.b16 %v1361
        %v1384 = vunpack.c.l.b16 %v1362
        %v1385 = vunpack.c.l.b16 %v1363
        %v1386 = vunpack.c.l.b16 %v1364
        %v1387 = vunpack.c.l.b16 %v1365
        %v1388 = vpack.c.b16 %v1381, %v1380
        %v1389 = vpack.c.b16 %v1383, %v1382
        %v1390 = vpack.c.b16 %v1385, %v1384
        %v1391 = vpack.c.b16 %v1387, %v1386
        %v1397 = vsel %vm1174, %v1368, 0
        %v1400 = vsel %vm1174, %v1369, 0
        %v1403 = vsel %vm1174, %v1370, 0
        %v1406 = vsel %vm1174, %v1371, 0
        %1408 = vmatprep.subr.bf16.mxu0 0
        %1409 = vmatpush1.bf16.msra.mxu0 %v1388
        %1410 = vmatprep.subr.bf16.mxu0 0
        %1411 = vmatpush1.bf16.msra.mxu0 %v1389
        %1412 = vmatprep.subr.bf16.mxu0 0
        %1413 = vmatpush1.bf16.msra.mxu0 %v1390
        %1414 = vmatprep.subr.bf16.mxu0 0
        %1415 = vmatpush1.bf16.msra.mxu0 %v1391
        %1416 = vmatprep.subr.bf16.mxu0 0
        %1417 = vmatpush1.bf16.msra.mxu0 0
        %1418 = vmatprep.subr.bf16.mxu0 0
        %1419 = vmatpush1.bf16.msra.mxu0 0
        %1420 = vmatprep.subr.bf16.mxu0 0
        %1421 = vmatpush1.bf16.msra.mxu0 0
        %1422 = vmatprep.subr.bf16.mxu0 0
        %1423 = vmatpush1.bf16.msra.mxu0 0
        %1424 = vmatprep.subr.bf16.mxu0 0
        %1425 = vmatpush1.bf16.msra.mxu0 0
        %1426 = vmatprep.subr.bf16.mxu0 0
        %1427 = vmatpush1.bf16.msra.mxu0 0
        %1428 = vmatprep.subr.bf16.mxu0 0
        %1429 = vmatpush1.bf16.msra.mxu0 0
        %1430 = vmatprep.subr.bf16.mxu0 0
        %1431 = vmatpush1.bf16.msra.mxu0 0
        %1432 = vmatprep.subr.bf16.mxu0 0
        %1433 = vmatpush1.bf16.msra.mxu0 0
        %1434 = vmatprep.subr.bf16.mxu0 0
        %1435 = vmatpush1.bf16.msra.mxu0 0
        %1436 = vmatprep.subr.bf16.mxu0 0
        %1437 = vmatpush1.bf16.msra.mxu0 0
        %1438 = vmatprep.subr.bf16.mxu0 0
        %1439 = vmatpush1.bf16.msra.mxu0 0
        %1440 = vmatprep.mubr.bf16.mxu0 0
        %1441 = vmatmul.mubr.bf16.gmra.mrb[0].mxu0 %v1397
        %v1442 = vpop.f32.mrb[0].mxu0
        %v1443 = vadd.f32 0.0, %v1442
        %v1444 = vpop.f32.mrb[0].mxu0
        %v1445 = vpop.f32.mrb[0].mxu0
        %v1446 = vadd.f32 0.0, %v1445
        %v1447 = vpop.f32.mrb[0].mxu0
        %1448 = vmatprep.mubr.bf16.mxu0 0
        %1449 = vmatmul.mubr.bf16.gmra.mrb[0].mxu0 %v1400
        %v1450 = vpop.f32.mrb[0].mxu0
        %v1451 = vadd.f32 0.0, %v1450
        %v1452 = vpop.f32.mrb[0].mxu0
        %v1453 = vpop.f32.mrb[0].mxu0
        %v1454 = vadd.f32 0.0, %v1453
        %v1455 = vpop.f32.mrb[0].mxu0
        %1456 = vmatprep.mubr.bf16.mxu0 0
        %1457 = vmatmul.mubr.bf16.gmra.mrb[0].mxu0 %v1403
        %v1458 = vpop.f32.mrb[0].mxu0
        %v1459 = vadd.f32 0.0, %v1458
        %v1460 = vpop.f32.mrb[0].mxu0
        %v1461 = vpop.f32.mrb[0].mxu0
        %v1462 = vadd.f32 0.0, %v1461
        %v1463 = vpop.f32.mrb[0].mxu0
        %1464 = vmatprep.mubr.bf16.mxu0 0
        %1465 = vmatmul.mubr.bf16.gmra.mrb[0].mxu0 %v1406
        %v1466 = vpop.f32.mrb[0].mxu0
        %v1467 = vadd.f32 0.0, %v1466
        %v1468 = vpop.f32.mrb[0].mxu0
        %v1469 = vpop.f32.mrb[0].mxu0
        %v1470 = vadd.f32 0.0, %v1469
        %v1471 = vpop.f32.mrb[0].mxu0
        %1472 = vdwg.mxu0
        %v1473 = vadd.f32 %v1327, %v1443
        %v1474 = vadd.f32 %v1330, %v1446
        %v1475 = vadd.f32 %v1335, %v1451
        %v1476 = vadd.f32 %v1338, %v1454
        %v1477 = vadd.f32 %v1343, %v1459
        %v1478 = vadd.f32 %v1346, %v1462
        %v1479 = vadd.f32 %v1351, %v1467
        %v1480 = vadd.f32 %v1354, %v1470
        %v1481 = vunpack.c.h.b16 %v968
        %v1482 = vpack.c.b16 %v1367, %v1367
        %v1483 = vpack.c.b16 %v1481, %v1481
        %v1485 = vshrl.u32 %v1482, 16
        %v1487 = vrot.slane %v1485, 4
        %v1488 = vshll.u32 %v1482, 16
        %v1490 = vrot.slane %v1488, 5
        %v1491 = vor.u32 %v1487, %v1490
        %v1492 = vrot.slane %v1491, 4
        %v1494 = vshll.u32 %v1483, 16
        %v1496 = vrot.slane %v1494, 5
        %v1497 = vsel %vm250, %v1492, %v1496
        %s1498 = scalar_lea.vmem %s3, 96
        %v1499 = vld [vmem:[%s1498] sm:$0xf]
        %v1500 = vld [vmem:[%s1498 + $0x4] sm:$0xf]
        %v1501 = vld [vmem:[%s1498 + $0x8] sm:$0xf]
        %v1502 = vld [vmem:[%s1498 + $0xc] sm:$0xf]
        %v1503 = vld [vmem:[%s1498 + $0x10] sm:$0xf]
        %v1504 = vld [vmem:[%s1498 + $0x14] sm:$0xf]
        %v1505 = vld [vmem:[%s1498 + $0x18] sm:$0xf]
        %v1506 = vld [vmem:[%s1498 + $0x1c] sm:$0xf]
        %v1507 = vunpack.c.l.b16 %v1497
        %v1508 = vpack.c.b16 %v1140, %v1139
        %v1509 = vpack.c.b16 %v1142, %v1141
        %v1510 = vpack.c.b16 %v1144, %v1143
        %v1511 = vpack.c.b16 %v1507, %v1145
        %v1520 = vunpack.c.l.b16 %v1499
        %v1521 = vunpack.c.l.b16 %v1500
        %v1522 = vunpack.c.l.b16 %v1501
        %v1523 = vunpack.c.l.b16 %v1502
        %v1524 = vunpack.c.l.b16 %v1503
        %v1525 = vunpack.c.l.b16 %v1504
        %v1526 = vunpack.c.l.b16 %v1505
        %v1527 = vunpack.c.l.b16 %v1506
        %v1528 = vpack.c.b16 %v1521, %v1520
        %v1529 = vpack.c.b16 %v1523, %v1522
        %v1530 = vpack.c.b16 %v1525, %v1524
        %v1531 = vpack.c.b16 %v1527, %v1526
        %v1537 = vsel %vm1174, %v1508, 0
        %v1540 = vsel %vm1174, %v1509, 0
        %v1543 = vsel %vm1174, %v1510, 0
        %v1546 = vsel %vm1174, %v1511, 0
        %1548 = vmatprep.subr.bf16.mxu0 0
        %1549 = vmatpush1.bf16.msra.mxu0 %v1528
        %1550 = vmatprep.subr.bf16.mxu0 0
        %1551 = vmatpush1.bf16.msra.mxu0 %v1529
        %1552 = vmatprep.subr.bf16.mxu0 0
        %1553 = vmatpush1.bf16.msra.mxu0 %v1530
        %1554 = vmatprep.subr.bf16.mxu0 0
        %1555 = vmatpush1.bf16.msra.mxu0 %v1531
        %1556 = vmatprep.subr.bf16.mxu0 0
        %1557 = vmatpush1.bf16.msra.mxu0 0
        %1558 = vmatprep.subr.bf16.mxu0 0
        %1559 = vmatpush1.bf16.msra.mxu0 0
        %1560 = vmatprep.subr.bf16.mxu0 0
        %1561 = vmatpush1.bf16.msra.mxu0 0
        %1562 = vmatprep.subr.bf16.mxu0 0
        %1563 = vmatpush1.bf16.msra.mxu0 0
        %1564 = vmatprep.subr.bf16.mxu0 0
        %1565 = vmatpush1.bf16.msra.mxu0 0
        %1566 = vmatprep.subr.bf16.mxu0 0
        %1567 = vmatpush1.bf16.msra.mxu0 0
        %1568 = vmatprep.subr.bf16.mxu0 0
        %1569 = vmatpush1.bf16.msra.mxu0 0
        %1570 = vmatprep.subr.bf16.mxu0 0
        %1571 = vmatpush1.bf16.msra.mxu0 0
        %1572 = vmatprep.subr.bf16.mxu0 0
        %1573 = vmatpush1.bf16.msra.mxu0 0
        %1574 = vmatprep.subr.bf16.mxu0 0
        %1575 = vmatpush1.bf16.msra.mxu0 0
        %1576 = vmatprep.subr.bf16.mxu0 0
        %1577 = vmatpush1.bf16.msra.mxu0 0
        %1578 = vmatprep.subr.bf16.mxu0 0
        %1579 = vmatpush1.bf16.msra.mxu0 0
        %1580 = vmatprep.mubr.bf16.mxu0 0
        %1581 = vmatmul.mubr.bf16.gmra.mrb[0].mxu0 %v1537
        %v1582 = vpop.f32.mrb[0].mxu0
        %v1583 = vadd.f32 0.0, %v1582
        %v1584 = vpop.f32.mrb[0].mxu0
        %v1585 = vpop.f32.mrb[0].mxu0
        %v1586 = vadd.f32 0.0, %v1585
        %v1587 = vpop.f32.mrb[0].mxu0
        %1588 = vmatprep.mubr.bf16.mxu0 0
        %1589 = vmatmul.mubr.bf16.gmra.mrb[0].mxu0 %v1540
        %v1590 = vpop.f32.mrb[0].mxu0
        %v1591 = vadd.f32 0.0, %v1590
        %v1592 = vpop.f32.mrb[0].mxu0
        %v1593 = vpop.f32.mrb[0].mxu0
        %v1594 = vadd.f32 0.0, %v1593
        %v1595 = vpop.f32.mrb[0].mxu0
        %1596 = vmatprep.mubr.bf16.mxu0 0
        %1597 = vmatmul.mubr.bf16.gmra.mrb[0].mxu0 %v1543
        %v1598 = vpop.f32.mrb[0].mxu0
        %v1599 = vadd.f32 0.0, %v1598
        %v1600 = vpop.f32.mrb[0].mxu0
        %v1601 = vpop.f32.mrb[0].mxu0
        %v1602 = vadd.f32 0.0, %v1601
        %v1603 = vpop.f32.mrb[0].mxu0
        %1604 = vmatprep.mubr.bf16.mxu0 0
        %1605 = vmatmul.mubr.bf16.gmra.mrb[0].mxu0 %v1546
        %v1606 = vpop.f32.mrb[0].mxu0
        %v1607 = vadd.f32 0.0, %v1606
        %v1608 = vpop.f32.mrb[0].mxu0
        %v1609 = vpop.f32.mrb[0].mxu0
        %v1610 = vadd.f32 0.0, %v1609
        %v1611 = vpop.f32.mrb[0].mxu0
        %1612 = vdwg.mxu0
        %v1613 = vadd.f32 %v1473, %v1583
        %v1614 = vadd.f32 %v1474, %v1586
        %v1615 = vadd.f32 %v1475, %v1591
        %v1616 = vadd.f32 %v1476, %v1594
        %v1617 = vadd.f32 %v1477, %v1599
        %v1618 = vadd.f32 %v1478, %v1602
        %v1619 = vadd.f32 %v1479, %v1607
        %v1620 = vadd.f32 %v1480, %v1610
        %v1621 = vld [vmem:[%s4] sm:$0x1]
        %v1623 = vlaneseq
        %v1624 = vshrl.u32 %v1623, 7
        %v1625 = vsub.s32 0, %v1624
        %v1626 = vrot.slane %v1621, %v1625
        %v1628 = vadd.f32 %v1613, %v1626
        %v1629 = vadd.f32 %v1614, %v1626
        %v1630 = vadd.f32 %v1615, %v1626
        %v1631 = vadd.f32 %v1616, %v1626
        %v1632 = vadd.f32 %v1617, %v1626
        %v1633 = vadd.f32 %v1618, %v1626
        %v1634 = vadd.f32 %v1619, %v1626
        %v1635 = vadd.f32 %v1620, %v1626
        %v1636 = vmax.f32 %v1628, 0.0
        %v1637 = vmax.f32 %v1629, 0.0
        %v1638 = vmax.f32 %v1630, 0.0
        %v1639 = vmax.f32 %v1631, 0.0
        %v1640 = vmax.f32 %v1632, 0.0
        %v1641 = vmax.f32 %v1633, 0.0
        %v1642 = vmax.f32 %v1634, 0.0
        %v1643 = vmax.f32 %v1635, 0.0
        %v1644 = vpack.c.bf16 %v1636, %v1636
        %v1645 = vpack.c.bf16 %v1637, %v1637
        %v1646 = vpack.c.bf16 %v1638, %v1638
        %v1647 = vpack.c.bf16 %v1639, %v1639
        %v1648 = vpack.c.bf16 %v1640, %v1640
        %v1649 = vpack.c.bf16 %v1641, %v1641
        %v1650 = vpack.c.bf16 %v1642, %v1642
        %v1651 = vpack.c.bf16 %v1643, %v1643
        %vm1652 = vcmask 257024
        %1653 = vst.msk [vmem:[%s217] sm:$0xf] %vm1652, %v1644
        %1654 = vst.msk [vmem:[%s217 + $0x4] sm:$0xf] %vm1652, %v1645
        %1655 = vst.msk [vmem:[%s217 + $0x8] sm:$0xf] %vm1652, %v1646
        %1656 = vst.msk [vmem:[%s217 + $0xc] sm:$0xf] %vm1652, %v1647
        %1657 = vst.msk [vmem:[%s217 + $0x10] sm:$0xf] %vm1652, %v1648
        %1658 = vst.msk [vmem:[%s217 + $0x14] sm:$0xf] %vm1652, %v1649
        %1659 = vst.msk [vmem:[%s217 + $0x18] sm:$0xf] %vm1652, %v1650
        %1660 = vst.msk [vmem:[%s217 + $0x1c] sm:$0xf] %vm1652, %v1651
        %s1661 = sand.u32 %s137, 1
        %s1662 = scalar_lea.sflag [#allocation3], %s1661
        %s1663 = sand.u32 %s137, 1
        %s1664 = smul.addr %s1663, 32
        %s1665 = scalar_lea.vmem [#allocation2], %s1664
        // Predicated region
        $region41: #{tpu_custom_call.1} parent=39 // pred_check
          %p1666 = pneg %p147
        $region42: #{tpu_custom_call.1} parent=39 // pred_check_branch
          %1668 = sbr.rel (%p1666) target = $region44
        $region43: #{tpu_custom_call.1} parent=39 // pred_region
          %s1670 = ssub.s32 512, 512
          %1671 = vsyncadd %s1662, %s1670
          %s1672 = smul.addr %s19, 8
          %s1673 = smul.addr %s1672, 64
          %s1674 = scalar_lea.hbm %s5, %s1673
          %s1675 = sshll.u32 %s1665, 4
          %s1676 = int_to_ptr.vmem [resolvable:$true] %s1675
          %1681 = dma.vmem_to_hbm [thread:$0]  %s1676, 512, %s1674, %s1662, 64, 64, 4
        $region44: #{tpu_custom_call.1} parent=39 // pred_fallthru
          _
      $region40: #{tpu_custom_call.1} parent=5 // pred_fallthru
        _
      %p1682 = scmp.le.s32.totalorder 2, %s14
      // Predicated region
      $region45: #{tpu_custom_call.1} parent=5 // pred_check
        %p1683 = pneg %p1682
      $region46: #{tpu_custom_call.1} parent=5 // pred_check_branch
        %1685 = sbr.rel (%p1683) target = $region48
      $region47: #{tpu_custom_call.1} parent=5 // pred_region
        %s1686 = ssub.s32 %s14, 2
        // Predicated region
        $region49: #{tpu_custom_call.1} parent=47 // pred_check
          %p1687 = pneg %p153
        $region50: #{tpu_custom_call.1} parent=47 // pred_check_branch
          %1689 = sbr.rel (%p1687) target = $region52
        $region51: #{tpu_custom_call.1} parent=47 // pred_region
          %s1690 = sand.u32 %s138, 1
          %s1691 = scalar_lea.sflag [#allocation3], %s1690
          %s1692 = sand.u32 %s138, 1
          %s1693 = smul.addr %s1692, 32
          %s1694 = scalar_lea.vmem [#allocation2], %s1693
          %1695 = dma.done %s1691, 512
        $region52: #{tpu_custom_call.1} parent=47 // pred_fallthru
          _
      $region48: #{tpu_custom_call.1} parent=5 // pred_fallthru
        _
    $region6: #{tpu_custom_call.1} parent=1 // loop_footer
      %s18 = sadd.s32 1, %s14
    $region7: #{tpu_custom_call.1} parent=1 // loop_footer_branch
      %13 = sbr.rel target = $region3
    $region8: #{tpu_custom_call.1} parent=1 // loop_exit
      _
    %1696 = vsyncpa [#allocation3], 1
    %s1697 = scalar_lea.sflag [#allocation3], 1
    %1698 = vsyncpa %s1697, 1

</llo_original>
